<compile_context>
chip_gen: v6e
topology: v6e:2x2x1
jax: 0.10.0
libtpu: 0.0.40
codegen_flags: <defaults>
</compile_context>

<pallas_src>
import functools

import jax
import jax.numpy as jnp
from jax.experimental import pallas as pl
from jax.experimental.pallas import tpu as pltpu

NUM_CLASSES = 10
PADDED_CLASSES = 128   # lane-dense output width (sliced back to 10 in the wrapper)
HIDDEN = 512


def _mlp_kernel(h_ref, w1_ref, b1_ref, w2_ref, b2_ref, w3_ref, b3_ref, o_ref):
    # Fused: relu(relu(h @ W1 + b1) @ W2 + b2) @ W3 + b3
    # h arrives f32; cast to bf16 on the VPU right before the MXU work (free next to
    # the matmuls). Every dot accumulates in f32.
    h = h_ref[...].astype(jnp.bfloat16)                                   # [tb, 512]
    z1 = jnp.dot(h, w1_ref[...], preferred_element_type=jnp.float32) + b1_ref[...]
    a1 = jnp.maximum(z1, 0.0).astype(jnp.bfloat16)
    z2 = jnp.dot(a1, w2_ref[...], preferred_element_type=jnp.float32) + b2_ref[...]
    a2 = jnp.maximum(z2, 0.0).astype(jnp.bfloat16)
    z3 = jnp.dot(a2, w3_ref[...], preferred_element_type=jnp.float32) + b3_ref[...]
    o_ref[...] = z3.astype(o_ref.dtype)                                   # f32 [tb, 128]


def prepare_params(w1, b1, w2, b2, w3, b3):
    """One-time (init-time) parameter prep: cast weights to bf16, lane-pad class dim.

    Weights are stored [in_features, out_features] (transposed vs. torch nn.Linear),
    biases as [1, out_features]. Doing this once keeps the per-call path free of the
    cast/pad HLOs that previously tripled weight HBM traffic."""
    w1_bf = jnp.asarray(w1, jnp.bfloat16)
    w2_bf = jnp.asarray(w2, jnp.bfloat16)
    w3_bf = jnp.pad(jnp.asarray(w3, jnp.bfloat16),
                    ((0, 0), (0, PADDED_CLASSES - NUM_CLASSES)))
    b1_f = jnp.asarray(b1, jnp.float32).reshape(1, HIDDEN)
    b2_f = jnp.asarray(b2, jnp.float32).reshape(1, HIDDEN)
    b3_f = jnp.pad(jnp.asarray(b3, jnp.float32).reshape(1, NUM_CLASSES),
                   ((0, 0), (0, PADDED_CLASSES - NUM_CLASSES)))
    return (w1_bf, b1_f, w2_bf, b2_f, w3_bf, b3_f)


def _round_up(x, m):
    return ((x + m - 1) // m) * m


@functools.partial(jax.jit, static_argnames=("block_b",))
def usps_label_predictor(h, params, *, block_b=512):
    """h: [B, 512] float32, params from prepare_params() -> logits [B, 10] float32."""
    w1_bf, b1_f, w2_bf, b2_f, w3_bf, b3_f = params
    B, D = h.shape
    assert D == HIDDEN

    # Batch tiling: large MXU/roofline-friendly tile; tiny batches clamp to a single
    # grid step (h is f32 -> 8-row sublane packing).
    tb = min(block_b, max(8, _round_up(B, 8)))
    # v7x megacore: for mid/large batches make sure there are >= 2 grid steps so the
    # "parallel" batch axis shards across both TensorCores (harmless on v5e/v6e).
    if B > 256 and pl.cdiv(B, tb) < 2:
        tb = max(8, _round_up(pl.cdiv(B, 2), 8))
    grid = (pl.cdiv(B, tb),)

    # Weights/biases (~1.2 MiB bf16) are grid-invariant: single-buffer them so the
    # pipeline doesn't allocate a useless second VMEM copy.
    const = lambda shape: pl.BlockSpec(shape, lambda i: (0, 0),
                                       pipeline_mode=pl.Buffered(1))

    out_padded = pl.pallas_call(
        _mlp_kernel,
        out_shape=jax.ShapeDtypeStruct((B, PADDED_CLASSES), jnp.float32),
        grid_spec=pltpu.PrefetchScalarGridSpec(
            num_scalar_prefetch=0,
            grid=grid,
            in_specs=[
                pl.BlockSpec((tb, HIDDEN), lambda i: (i, 0)),    # h tile (f32)
                const((HIDDEN, HIDDEN)),                         # w1 (bf16)
                const((1, HIDDEN)),                              # b1 (f32)
                const((HIDDEN, HIDDEN)),                         # w2 (bf16)
                const((1, HIDDEN)),                              # b2 (f32)
                const((HIDDEN, PADDED_CLASSES)),                 # w3 padded (bf16)
                const((1, PADDED_CLASSES)),                      # b3 padded (f32)
            ],
            out_specs=pl.BlockSpec((tb, PADDED_CLASSES), lambda i: (i, 0)),
        ),
        compiler_params=pltpu.CompilerParams(
            dimension_semantics=("parallel",)
        ),
    )(h, w1_bf, b1_f, w2_bf, b2_f, w3_bf, b3_f)

    return out_padded[:, :NUM_CLASSES]


def _init_linear(key, fan_in, fan_out):
    """Deterministic init mimicking PyTorch nn.Linear default (uniform +-1/sqrt(fan_in)).
    Returns W as [fan_in, fan_out] (transposed vs. torch) and b as [fan_out]."""
    kw, kb = jax.random.split(key)
    bound = 1.0 / jnp.sqrt(jnp.float32(fan_in))
    w = jax.random.uniform(kw, (fan_in, fan_out), jnp.float32, -bound, bound)
    b = jax.random.uniform(kb, (fan_out,), jnp.float32, -bound, bound)
    return w, b


def _reference(h, w1, b1, w2, b2, w3, b3):
    # Mirrors the kernel's precision recipe: bf16 operands, f32 accumulation.
    hb = h.astype(jnp.bfloat16)
    z1 = jnp.dot(hb, w1.astype(jnp.bfloat16), preferred_element_type=jnp.float32) + b1
    a1 = jnp.maximum(z1, 0.0).astype(jnp.bfloat16)
    z2 = jnp.dot(a1, w2.astype(jnp.bfloat16), preferred_element_type=jnp.float32) + b2
    a2 = jnp.maximum(z2, 0.0).astype(jnp.bfloat16)
    z3 = jnp.dot(a2, w3.astype(jnp.bfloat16), preferred_element_type=jnp.float32) + b3
    return z3


if __name__ == "__main__":
    key = jax.random.PRNGKey(0)
    k_h, k1, k2, k3 = jax.random.split(key, 4)

    batch = 8
    h = jax.random.normal(k_h, (batch, HIDDEN), jnp.float32)

    w1, b1 = _init_linear(k1, HIDDEN, HIDDEN)
    w2, b2 = _init_linear(k2, HIDDEN, HIDDEN)
    w3, b3 = _init_linear(k3, HIDDEN, NUM_CLASSES)

    # One-time parameter prep (bf16 cast + class-dim pad) outside the per-call path.
    params = prepare_params(w1, b1, w2, b2, w3, b3)

    out = usps_label_predictor(h, params)
    out = jax.block_until_ready(out)

    ref = _reference(h, w1, b1, w2, b2, w3, b3)
    assert out.shape == (batch, NUM_CLASSES)
    assert jnp.allclose(out, ref, atol=1e-2, rtol=1e-2), (
        f"max abs err = {jnp.max(jnp.abs(out - ref))}")
    print("KERNEL_OK")
</pallas_src>

<mosaic_0001>
module attributes {stable_mosaic.version = 11 : i64} {
  func.func @_mlp_kernel(%arg0: i32, %arg1: memref<8x512xf32, #tpu.memory_space<vmem>>, %arg2: memref<512x512xbf16, #tpu.memory_space<vmem>>, %arg3: memref<1x512xf32, #tpu.memory_space<vmem>>, %arg4: memref<512x512xbf16, #tpu.memory_space<vmem>>, %arg5: memref<1x512xf32, #tpu.memory_space<vmem>>, %arg6: memref<512x128xbf16, #tpu.memory_space<vmem>>, %arg7: memref<1x128xf32, #tpu.memory_space<vmem>>, %arg8: memref<8x128xf32, #tpu.memory_space<vmem>>) attributes {dimension_semantics = [#tpu.dimension_semantics<parallel>], iteration_bounds = array<i64: 1>, scalar_prefetch = 0 : i64, scratch_operands = 0 : i64, tpu.core_type = #tpu.core_type<tc>, window_params = [{transform_indices = @transform_0, window_bounds = array<i64: 8, 512>}, {pipeline_mode = #tpu.pipeline_mode<synchronous>, transform_indices = @transform_1, window_bounds = array<i64: 512, 512>}, {pipeline_mode = #tpu.pipeline_mode<synchronous>, transform_indices = @transform_2, window_bounds = array<i64: 1, 512>}, {pipeline_mode = #tpu.pipeline_mode<synchronous>, transform_indices = @transform_3, window_bounds = array<i64: 512, 512>}, {pipeline_mode = #tpu.pipeline_mode<synchronous>, transform_indices = @transform_4, window_bounds = array<i64: 1, 512>}, {pipeline_mode = #tpu.pipeline_mode<synchronous>, transform_indices = @transform_5, window_bounds = array<i64: 512, 128>}, {pipeline_mode = #tpu.pipeline_mode<synchronous>, transform_indices = @transform_6, window_bounds = array<i64: 1, 128>}, {transform_indices = @transform_7, window_bounds = array<i64: 8, 128>}]} {
    %c0 = arith.constant 0 : index
    %c0_0 = arith.constant 0 : index
    %0 = vector.load %arg1[%c0, %c0_0] : memref<8x512xf32, #tpu.memory_space<vmem>>, vector<8x512xf32>
    %1 = arith.truncf %0 : vector<8x512xf32> to vector<8x512xbf16>
    %c0_1 = arith.constant 0 : index
    %c0_2 = arith.constant 0 : index
    %2 = vector.load %arg2[%c0_1, %c0_2] : memref<512x512xbf16, #tpu.memory_space<vmem>>, vector<512x512xbf16>
    %cst = arith.constant dense<0.000000e+00> : vector<8x512xf32>
    %3 = tpu.matmul %1, %2, %cst {dimension_numbers = #tpu.dot_dimension_numbers<[1], [0], [0], [1], [0, 0, 1, 1], [], []>} : vector<8x512xbf16>, vector<512x512xbf16>, vector<8x512xf32> -> vector<8x512xf32>
    %c0_3 = arith.constant 0 : index
    %c0_4 = arith.constant 0 : index
    %4 = vector.load %arg3[%c0_3, %c0_4] : memref<1x512xf32, #tpu.memory_space<vmem>>, vector<1x512xf32>
    %5 = vector.broadcast %4 : vector<1x512xf32> to vector<8x512xf32>
    %6 = arith.addf %3, %5 : vector<8x512xf32>
    %cst_5 = arith.constant 0.000000e+00 : f32
    %7 = vector.broadcast %cst_5 : f32 to vector<8x512xf32>
    %8 = arith.maximumf %6, %7 : vector<8x512xf32>
    %9 = arith.truncf %8 : vector<8x512xf32> to vector<8x512xbf16>
    %c0_6 = arith.constant 0 : index
    %c0_7 = arith.constant 0 : index
    %10 = vector.load %arg4[%c0_6, %c0_7] : memref<512x512xbf16, #tpu.memory_space<vmem>>, vector<512x512xbf16>
    %cst_8 = arith.constant dense<0.000000e+00> : vector<8x512xf32>
    %11 = tpu.matmul %9, %10, %cst_8 {dimension_numbers = #tpu.dot_dimension_numbers<[1], [0], [0], [1], [0, 0, 1, 1], [], []>} : vector<8x512xbf16>, vector<512x512xbf16>, vector<8x512xf32> -> vector<8x512xf32>
    %c0_9 = arith.constant 0 : index
    %c0_10 = arith.constant 0 : index
    %12 = vector.load %arg5[%c0_9, %c0_10] : memref<1x512xf32, #tpu.memory_space<vmem>>, vector<1x512xf32>
    %13 = vector.broadcast %12 : vector<1x512xf32> to vector<8x512xf32>
    %14 = arith.addf %11, %13 : vector<8x512xf32>
    %cst_11 = arith.constant 0.000000e+00 : f32
    %15 = vector.broadcast %cst_11 : f32 to vector<8x512xf32>
    %16 = arith.maximumf %14, %15 : vector<8x512xf32>
    %17 = arith.truncf %16 : vector<8x512xf32> to vector<8x512xbf16>
    %c0_12 = arith.constant 0 : index
    %c0_13 = arith.constant 0 : index
    %18 = vector.load %arg6[%c0_12, %c0_13] : memref<512x128xbf16, #tpu.memory_space<vmem>>, vector<512x128xbf16>
    %cst_14 = arith.constant dense<0.000000e+00> : vector<8x128xf32>
    %19 = tpu.matmul %17, %18, %cst_14 {dimension_numbers = #tpu.dot_dimension_numbers<[1], [0], [0], [1], [0, 0, 1, 1], [], []>} : vector<8x512xbf16>, vector<512x128xbf16>, vector<8x128xf32> -> vector<8x128xf32>
    %c0_15 = arith.constant 0 : index
    %c0_16 = arith.constant 0 : index
    %20 = vector.load %arg7[%c0_15, %c0_16] : memref<1x128xf32, #tpu.memory_space<vmem>>, vector<1x128xf32>
    %21 = vector.broadcast %20 : vector<1x128xf32> to vector<8x128xf32>
    %22 = arith.addf %19, %21 : vector<8x128xf32>
    %c0_17 = arith.constant 0 : index
    %c0_18 = arith.constant 0 : index
    %23 = vector.load %arg8[%c0_17, %c0_18] : memref<8x128xf32, #tpu.memory_space<vmem>>, vector<8x128xf32>
    tpu.vector_store %arg8[%c0_17, %c0_18], %22 {strides = array<i32>} : memref<8x128xf32, #tpu.memory_space<vmem>>, vector<8x128xf32>,
    return
  }
  func.func @transform_0(%arg0: i32) -> (i32, i32) {
    %c0_i32 = arith.constant 0 : i32
    %c0_i32_0 = arith.constant 0 : i32
    return %arg0, %c0_i32 : i32, i32
  }
  func.func @transform_1(%arg0: i32) -> (i32, i32) {
    %c0_i32 = arith.constant 0 : i32
    %c0_i32_0 = arith.constant 0 : i32
    %c0_i32_1 = arith.constant 0 : i32
    return %c0_i32, %c0_i32_0 : i32, i32
  }
  func.func @transform_2(%arg0: i32) -> (i32, i32) {
    %c0_i32 = arith.constant 0 : i32
    %c0_i32_0 = arith.constant 0 : i32
    %c0_i32_1 = arith.constant 0 : i32
    return %c0_i32, %c0_i32_0 : i32, i32
  }
  func.func @transform_3(%arg0: i32) -> (i32, i32) {
    %c0_i32 = arith.constant 0 : i32
    %c0_i32_0 = arith.constant 0 : i32
    %c0_i32_1 = arith.constant 0 : i32
    return %c0_i32, %c0_i32_0 : i32, i32
  }
  func.func @transform_4(%arg0: i32) -> (i32, i32) {
    %c0_i32 = arith.constant 0 : i32
    %c0_i32_0 = arith.constant 0 : i32
    %c0_i32_1 = arith.constant 0 : i32
    return %c0_i32, %c0_i32_0 : i32, i32
  }
  func.func @transform_5(%arg0: i32) -> (i32, i32) {
    %c0_i32 = arith.constant 0 : i32
    %c0_i32_0 = arith.constant 0 : i32
    %c0_i32_1 = arith.constant 0 : i32
    return %c0_i32, %c0_i32_0 : i32, i32
  }
  func.func @transform_6(%arg0: i32) -> (i32, i32) {
    %c0_i32 = arith.constant 0 : i32
    %c0_i32_0 = arith.constant 0 : i32
    %c0_i32_1 = arith.constant 0 : i32
    return %c0_i32, %c0_i32_0 : i32, i32
  }
  func.func @transform_7(%arg0: i32) -> (i32, i32) {
    %c0_i32 = arith.constant 0 : i32
    %c0_i32_0 = arith.constant 0 : i32
    return %arg0, %c0_i32 : i32, i32
  }
}

</mosaic_0001>

<llo_original>
// kernel: usps_label_predictor.1
$region0: #{usps_label_predictor.1}
  #allocation0 [shape = 'u32[]', space=smem, size = 0x4, offset = 0x4, fixed_abs, tag = 'smem constant byte address 0x4 - core index']
  #allocation1 [shape = 'u32[144,128]{1,0:T(1,128)}', space=vmem, size = 0x12000, scoped, tag = 'internal scratch']
  %s0 = inlined_call_operand.hbm [shape: f32[8,512], index: 0, kind: input, shape index: {}]
  %s1 = inlined_call_operand.hbm [shape: bf16[512,512], index: 1, kind: input, shape index: {}]
  %s2 = inlined_call_operand.hbm [shape: f32[1,512], index: 2, kind: input, shape index: {}]
  %s3 = inlined_call_operand.hbm [shape: bf16[512,512], index: 3, kind: input, shape index: {}]
  %s4 = inlined_call_operand.vmem [shape: f32[1,512], index: 4, kind: input, shape index: {}]
  %s5 = inlined_call_operand.hbm [shape: bf16[512,128], index: 5, kind: input, shape index: {}]
  %s6 = inlined_call_operand.vmem [shape: f32[1,128], index: 6, kind: input, shape index: {}]
  %s7 = inlined_call_operand.hbm [shape: f32[8,128], index: 7, kind: output, shape index: {}]
  %s8 = sld [smem:[#allocation0]]
  $region58: #{usps_label_predictor.1} parent=0
    _
  %s10 = ssub.s32 1, %s8
  %s11 = scalar_select 0, %s10, %s8
  $region1: #{usps_label_predictor.1} parent=0
    #allocation2 [shape = 'u8[16384]{0}', space=vmem, size = 0x4000, scoped, tag = 'input window, operand 0, single buffered']
    #allocation3 [shape = 's32[1]{0}', space=sflag, size = 0x4, scoped, tag = 'scoped memory for usps_label_predictor.1']
    #allocation4 [shape = 's32[1]{0}', space=sflag, size = 0x4, scoped, tag = 'scoped memory for usps_label_predictor.1']
    #allocation5 [shape = 'u8[524288]{0}', space=vmem, size = 0x80000, scoped, tag = 'input window, operand 1, single buffered']
    #allocation6 [shape = 's32[1]{0}', space=sflag, size = 0x4, scoped, tag = 'scoped memory for usps_label_predictor.1']
    #allocation7 [shape = 'u8[2048]{0}', space=vmem, size = 0x800, scoped, tag = 'input window, operand 2, single buffered']
    #allocation8 [shape = 'u8[524288]{0}', space=vmem, size = 0x80000, scoped, tag = 'input window, operand 3, single buffered']
    #allocation9 [shape = 's32[1]{0}', space=sflag, size = 0x4, scoped, tag = 'scoped memory for usps_label_predictor.1']
    #allocation10 [shape = 'u8[131072]{0}', space=vmem, size = 0x20000, scoped, tag = 'input window, operand 5, single buffered']
    #allocation11 [shape = 'u8[4096]{0}', space=vmem, size = 0x1000, scoped, tag = 'output window, operand 0, single buffered']
    %12 = vsyncpa [#allocation3], 0
    %13 = vsyncpa [#allocation6], 0
    %14 = vsyncpa [#allocation9], 0
    %15 = vsyncpa [#allocation4], 0
    // Predicated region
    $region2: #{usps_label_predictor.1} parent=1 // pred_check
      _
    $region3: #{usps_label_predictor.1} parent=1 // pred_check_branch
      %17 = sbr.rel (0) target = $region5
    $region4: #{usps_label_predictor.1} parent=1 // pred_region
      %s19 = ssub.s32 512, 512
      %20 = vsyncadd [#allocation3], %s19
      %s22 = sshll.u32 [#allocation2], 4
      %s23 = int_to_ptr.vmem [resolvable:$true] %s22
      %25 = dma.hbm_to_vmem [thread:$0]  %s0, 512, %s23, [#allocation3]
    $region5: #{usps_label_predictor.1} parent=1 // pred_fallthru
      _
    // Predicated region
    $region6: #{usps_label_predictor.1} parent=1 // pred_check
      _
    $region7: #{usps_label_predictor.1} parent=1 // pred_check_branch
      %27 = sbr.rel (0) target = $region9
    $region8: #{usps_label_predictor.1} parent=1 // pred_region
      %s29 = ssub.s32 16384, 16384
      %30 = vsyncadd [#allocation6], %s29
      %s31 = sshll.u32 [#allocation5], 4
      %s32 = int_to_ptr.vmem [resolvable:$true] %s31
      %37 = dma.hbm_to_vmem [thread:$0]  %s1, 16384, %s32, [#allocation6], 256, 256, 16
    $region9: #{usps_label_predictor.1} parent=1 // pred_fallthru
      _
    // Predicated region
    $region10: #{usps_label_predictor.1} parent=1 // pred_check
      _
    $region11: #{usps_label_predictor.1} parent=1 // pred_check_branch
      %39 = sbr.rel (0) target = $region13
    $region12: #{usps_label_predictor.1} parent=1 // pred_region
      %s41 = ssub.s32 64, 64
      %42 = vsyncadd [#allocation6], %s41
      %s44 = sshll.u32 [#allocation7], 4
      %s45 = int_to_ptr.vmem [resolvable:$true] %s44
      %47 = dma.hbm_to_vmem [thread:$0]  %s2, 64, %s45, [#allocation6]
    $region13: #{usps_label_predictor.1} parent=1 // pred_fallthru
      _
    // Predicated region
    $region14: #{usps_label_predictor.1} parent=1 // pred_check
      _
    $region15: #{usps_label_predictor.1} parent=1 // pred_check_branch
      %49 = sbr.rel (0) target = $region17
    $region16: #{usps_label_predictor.1} parent=1 // pred_region
      %s51 = ssub.s32 16384, 16384
      %52 = vsyncadd [#allocation9], %s51
      %s53 = sshll.u32 [#allocation8], 4
      %s54 = int_to_ptr.vmem [resolvable:$true] %s53
      %59 = dma.hbm_to_vmem [thread:$0]  %s3, 16384, %s54, [#allocation9], 256, 256, 16
    $region17: #{usps_label_predictor.1} parent=1 // pred_fallthru
      _
    // Predicated region
    $region18: #{usps_label_predictor.1} parent=1 // pred_check
      _
    $region19: #{usps_label_predictor.1} parent=1 // pred_check_branch
      %61 = sbr.rel (0) target = $region21
    $region20: #{usps_label_predictor.1} parent=1 // pred_region
      _
    $region21: #{usps_label_predictor.1} parent=1 // pred_fallthru
      _
    // Predicated region
    $region22: #{usps_label_predictor.1} parent=1 // pred_check
      _
    $region23: #{usps_label_predictor.1} parent=1 // pred_check_branch
      %63 = sbr.rel (0) target = $region25
    $region24: #{usps_label_predictor.1} parent=1 // pred_region
      %s65 = ssub.s32 4096, 4096
      %66 = vsyncadd [#allocation9], %s65
      %s67 = sshll.u32 [#allocation10], 4
      %s68 = int_to_ptr.vmem [resolvable:$true] %s67
      %73 = dma.hbm_to_vmem [thread:$0]  %s5, 4096, %s68, [#allocation9], 64, 64, 4
    $region25: #{usps_label_predictor.1} parent=1 // pred_fallthru
      _
    // Predicated region
    $region26: #{usps_label_predictor.1} parent=1 // pred_check
      _
    $region27: #{usps_label_predictor.1} parent=1 // pred_check_branch
      %75 = sbr.rel (0) target = $region29
    $region28: #{usps_label_predictor.1} parent=1 // pred_region
      _
    $region29: #{usps_label_predictor.1} parent=1 // pred_fallthru
      _
    // Predicated region
    $region30: #{usps_label_predictor.1} parent=1 // pred_check
      _
    $region31: #{usps_label_predictor.1} parent=1 // pred_check_branch
      %77 = sbr.rel (0) target = $region33
    $region32: #{usps_label_predictor.1} parent=1 // pred_region
      %78 = dma.done [#allocation3], 512
    $region33: #{usps_label_predictor.1} parent=1 // pred_fallthru
      _
    // Predicated region
    $region34: #{usps_label_predictor.1} parent=1 // pred_check
      _
    $region35: #{usps_label_predictor.1} parent=1 // pred_check_branch
      %80 = sbr.rel (0) target = $region37
    $region36: #{usps_label_predictor.1} parent=1 // pred_region
      %81 = dma.done [#allocation6], 16384
    $region37: #{usps_label_predictor.1} parent=1 // pred_fallthru
      _
    // Predicated region
    $region38: #{usps_label_predictor.1} parent=1 // pred_check
      _
    $region39: #{usps_label_predictor.1} parent=1 // pred_check_branch
      %83 = sbr.rel (0) target = $region41
    $region40: #{usps_label_predictor.1} parent=1 // pred_region
      %84 = dma.done [#allocation6], 64
    $region41: #{usps_label_predictor.1} parent=1 // pred_fallthru
      _
    // Predicated region
    $region42: #{usps_label_predictor.1} parent=1 // pred_check
      _
    $region43: #{usps_label_predictor.1} parent=1 // pred_check_branch
      %86 = sbr.rel (0) target = $region45
    $region44: #{usps_label_predictor.1} parent=1 // pred_region
      %87 = dma.done [#allocation9], 16384
    $region45: #{usps_label_predictor.1} parent=1 // pred_fallthru
      _
    // Predicated region
    $region46: #{usps_label_predictor.1} parent=1 // pred_check
      _
    $region47: #{usps_label_predictor.1} parent=1 // pred_check_branch
      %89 = sbr.rel (0) target = $region49
    $region48: #{usps_label_predictor.1} parent=1 // pred_region
      %90 = dma.done [#allocation9], 4096
    $region49: #{usps_label_predictor.1} parent=1 // pred_fallthru
      _
    %v92 = vld [vmem:[#allocation2] sm:$0xff]
    %v93 = vld [vmem:[#allocation2 + $0x8] sm:$0xff]
    %v94 = vld [vmem:[#allocation2 + $0x10] sm:$0xff]
    %v95 = vld [vmem:[#allocation2 + $0x18] sm:$0xff]
    %v96 = vpack.c.bf16 %v92, %v92
    %v97 = vpack.c.bf16 %v93, %v93
    %v98 = vpack.c.bf16 %v94, %v94
    %v99 = vpack.c.bf16 %v95, %v95
    %v100 = vld [vmem:[#allocation5] sm:$0xff]
    %v101 = vld [vmem:[#allocation5 + $0x8] sm:$0xff]
    %v102 = vld [vmem:[#allocation5 + $0x10] sm:$0xff]
    %v103 = vld [vmem:[#allocation5 + $0x18] sm:$0xff]
    %v104 = vld [vmem:[#allocation5 + $0x20] sm:$0xff]
    %v105 = vld [vmem:[#allocation5 + $0x28] sm:$0xff]
    %v106 = vld [vmem:[#allocation5 + $0x30] sm:$0xff]
    %v107 = vld [vmem:[#allocation5 + $0x38] sm:$0xff]
    %v108 = vld [vmem:[#allocation5 + $0x40] sm:$0xff]
    %v109 = vld [vmem:[#allocation5 + $0x48] sm:$0xff]
    %v110 = vld [vmem:[#allocation5 + $0x50] sm:$0xff]
    %v111 = vld [vmem:[#allocation5 + $0x58] sm:$0xff]
    %v112 = vld [vmem:[#allocation5 + $0x60] sm:$0xff]
    %v113 = vld [vmem:[#allocation5 + $0x68] sm:$0xff]
    %v114 = vld [vmem:[#allocation5 + $0x70] sm:$0xff]
    %v115 = vld [vmem:[#allocation5 + $0x78] sm:$0xff]
    %v116 = vld [vmem:[#allocation5 + $0x80] sm:$0xff]
    %v117 = vld [vmem:[#allocation5 + $0x88] sm:$0xff]
    %v118 = vld [vmem:[#allocation5 + $0x90] sm:$0xff]
    %v119 = vld [vmem:[#allocation5 + $0x98] sm:$0xff]
    %v120 = vld [vmem:[#allocation5 + $0xa0] sm:$0xff]
    %v121 = vld [vmem:[#allocation5 + $0xa8] sm:$0xff]
    %v122 = vld [vmem:[#allocation5 + $0xb0] sm:$0xff]
    %v123 = vld [vmem:[#allocation5 + $0xb8] sm:$0xff]
    %v124 = vld [vmem:[#allocation5 + $0xc0] sm:$0xff]
    %v125 = vld [vmem:[#allocation5 + $0xc8] sm:$0xff]
    %v126 = vld [vmem:[#allocation5 + $0xd0] sm:$0xff]
    %v127 = vld [vmem:[#allocation5 + $0xd8] sm:$0xff]
    %v128 = vld [vmem:[#allocation5 + $0xe0] sm:$0xff]
    %v129 = vld [vmem:[#allocation5 + $0xe8] sm:$0xff]
    %v130 = vld [vmem:[#allocation5 + $0xf0] sm:$0xff]
    %v131 = vld [vmem:[#allocation5 + $0xf8] sm:$0xff]
    %v132 = vld [vmem:[#allocation5 + $0x100] sm:$0xff]
    %v133 = vld [vmem:[#allocation5 + $0x108] sm:$0xff]
    %v134 = vld [vmem:[#allocation5 + $0x110] sm:$0xff]
    %v135 = vld [vmem:[#allocation5 + $0x118] sm:$0xff]
    %v136 = vld [vmem:[#allocation5 + $0x120] sm:$0xff]
    %v137 = vld [vmem:[#allocation5 + $0x128] sm:$0xff]
    %v138 = vld [vmem:[#allocation5 + $0x130] sm:$0xff]
    %v139 = vld [vmem:[#allocation5 + $0x138] sm:$0xff]
    %v140 = vld [vmem:[#allocation5 + $0x140] sm:$0xff]
    %v141 = vld [vmem:[#allocation5 + $0x148] sm:$0xff]
    %v142 = vld [vmem:[#allocation5 + $0x150] sm:$0xff]
    %v143 = vld [vmem:[#allocation5 + $0x158] sm:$0xff]
    %v144 = vld [vmem:[#allocation5 + $0x160] sm:$0xff]
    %v145 = vld [vmem:[#allocation5 + $0x168] sm:$0xff]
    %v146 = vld [vmem:[#allocation5 + $0x170] sm:$0xff]
    %v147 = vld [vmem:[#allocation5 + $0x178] sm:$0xff]
    %v148 = vld [vmem:[#allocation5 + $0x180] sm:$0xff]
    %v149 = vld [vmem:[#allocation5 + $0x188] sm:$0xff]
    %v150 = vld [vmem:[#allocation5 + $0x190] sm:$0xff]
    %v151 = vld [vmem:[#allocation5 + $0x198] sm:$0xff]
    %v152 = vld [vmem:[#allocation5 + $0x1a0] sm:$0xff]
    %v153 = vld [vmem:[#allocation5 + $0x1a8] sm:$0xff]
    %v154 = vld [vmem:[#allocation5 + $0x1b0] sm:$0xff]
    %v155 = vld [vmem:[#allocation5 + $0x1b8] sm:$0xff]
    %v156 = vld [vmem:[#allocation5 + $0x1c0] sm:$0xff]
    %v157 = vld [vmem:[#allocation5 + $0x1c8] sm:$0xff]
    %v158 = vld [vmem:[#allocation5 + $0x1d0] sm:$0xff]
    %v159 = vld [vmem:[#allocation5 + $0x1d8] sm:$0xff]
    %v160 = vld [vmem:[#allocation5 + $0x1e0] sm:$0xff]
    %v161 = vld [vmem:[#allocation5 + $0x1e8] sm:$0xff]
    %v162 = vld [vmem:[#allocation5 + $0x1f0] sm:$0xff]
    %v163 = vld [vmem:[#allocation5 + $0x1f8] sm:$0xff]
    %v164 = vld [vmem:[#allocation5 + $0x200] sm:$0xff]
    %v165 = vld [vmem:[#allocation5 + $0x208] sm:$0xff]
    %v166 = vld [vmem:[#allocation5 + $0x210] sm:$0xff]
    %v167 = vld [vmem:[#allocation5 + $0x218] sm:$0xff]
    %v168 = vld [vmem:[#allocation5 + $0x220] sm:$0xff]
    %v169 = vld [vmem:[#allocation5 + $0x228] sm:$0xff]
    %v170 = vld [vmem:[#allocation5 + $0x230] sm:$0xff]
    %v171 = vld [vmem:[#allocation5 + $0x238] sm:$0xff]
    %v172 = vld [vmem:[#allocation5 + $0x240] sm:$0xff]
    %v173 = vld [vmem:[#allocation5 + $0x248] sm:$0xff]
    %v174 = vld [vmem:[#allocation5 + $0x250] sm:$0xff]
    %v175 = vld [vmem:[#allocation5 + $0x258] sm:$0xff]
    %v176 = vld [vmem:[#allocation5 + $0x260] sm:$0xff]
    %v177 = vld [vmem:[#allocation5 + $0x268] sm:$0xff]
    %v178 = vld [vmem:[#allocation5 + $0x270] sm:$0xff]
    %v179 = vld [vmem:[#allocation5 + $0x278] sm:$0xff]
    %v180 = vld [vmem:[#allocation5 + $0x280] sm:$0xff]
    %v181 = vld [vmem:[#allocation5 + $0x288] sm:$0xff]
    %v182 = vld [vmem:[#allocation5 + $0x290] sm:$0xff]
    %v183 = vld [vmem:[#allocation5 + $0x298] sm:$0xff]
    %v184 = vld [vmem:[#allocation5 + $0x2a0] sm:$0xff]
    %v185 = vld [vmem:[#allocation5 + $0x2a8] sm:$0xff]
    %v186 = vld [vmem:[#allocation5 + $0x2b0] sm:$0xff]
    %v187 = vld [vmem:[#allocation5 + $0x2b8] sm:$0xff]
    %v188 = vld [vmem:[#allocation5 + $0x2c0] sm:$0xff]
    %v189 = vld [vmem:[#allocation5 + $0x2c8] sm:$0xff]
    %v190 = vld [vmem:[#allocation5 + $0x2d0] sm:$0xff]
    %v191 = vld [vmem:[#allocation5 + $0x2d8] sm:$0xff]
    %v192 = vld [vmem:[#allocation5 + $0x2e0] sm:$0xff]
    %v193 = vld [vmem:[#allocation5 + $0x2e8] sm:$0xff]
    %v194 = vld [vmem:[#allocation5 + $0x2f0] sm:$0xff]
    %v195 = vld [vmem:[#allocation5 + $0x2f8] sm:$0xff]
    %v196 = vld [vmem:[#allocation5 + $0x300] sm:$0xff]
    %v197 = vld [vmem:[#allocation5 + $0x308] sm:$0xff]
    %v198 = vld [vmem:[#allocation5 + $0x310] sm:$0xff]
    %v199 = vld [vmem:[#allocation5 + $0x318] sm:$0xff]
    %v200 = vld [vmem:[#allocation5 + $0x320] sm:$0xff]
    %v201 = vld [vmem:[#allocation5 + $0x328] sm:$0xff]
    %v202 = vld [vmem:[#allocation5 + $0x330] sm:$0xff]
    %v203 = vld [vmem:[#allocation5 + $0x338] sm:$0xff]
    %v204 = vld [vmem:[#allocation5 + $0x340] sm:$0xff]
    %v205 = vld [vmem:[#allocation5 + $0x348] sm:$0xff]
    %v206 = vld [vmem:[#allocation5 + $0x350] sm:$0xff]
    %v207 = vld [vmem:[#allocation5 + $0x358] sm:$0xff]
    %v208 = vld [vmem:[#allocation5 + $0x360] sm:$0xff]
    %v209 = vld [vmem:[#allocation5 + $0x368] sm:$0xff]
    %v210 = vld [vmem:[#allocation5 + $0x370] sm:$0xff]
    %v211 = vld [vmem:[#allocation5 + $0x378] sm:$0xff]
    %v212 = vld [vmem:[#allocation5 + $0x380] sm:$0xff]
    %v213 = vld [vmem:[#allocation5 + $0x388] sm:$0xff]
    %v214 = vld [vmem:[#allocation5 + $0x390] sm:$0xff]
    %v215 = vld [vmem:[#allocation5 + $0x398] sm:$0xff]
    %v216 = vld [vmem:[#allocation5 + $0x3a0] sm:$0xff]
    %v217 = vld [vmem:[#allocation5 + $0x3a8] sm:$0xff]
    %v218 = vld [vmem:[#allocation5 + $0x3b0] sm:$0xff]
    %v219 = vld [vmem:[#allocation5 + $0x3b8] sm:$0xff]
    %v220 = vld [vmem:[#allocation5 + $0x3c0] sm:$0xff]
    %v221 = vld [vmem:[#allocation5 + $0x3c8] sm:$0xff]
    %v222 = vld [vmem:[#allocation5 + $0x3d0] sm:$0xff]
    %v223 = vld [vmem:[#allocation5 + $0x3d8] sm:$0xff]
    %v224 = vld [vmem:[#allocation5 + $0x3e0] sm:$0xff]
    %v225 = vld [vmem:[#allocation5 + $0x3e8] sm:$0xff]
    %v226 = vld [vmem:[#allocation5 + $0x3f0] sm:$0xff]
    %v227 = vld [vmem:[#allocation5 + $0x3f8] sm:$0xff]
    %v228 = vld [vmem:[#allocation7] sm:$0xf]
    %v230 = vlaneseq
    %v231 = vshrl.u32 %v230, 7
    %v232 = vsub.s32 0, %v231
    %v233 = vrot.slane %v228, %v232
    %v234 = vlaneseq
    %v235 = vshrl.u32 %v234, 7
    %v236 = vsub.s32 1, %v235
    %v237 = vrot.slane %v228, %v236
    %v238 = vlaneseq
    %v239 = vshrl.u32 %v238, 7
    %v240 = vsub.s32 2, %v239
    %v241 = vrot.slane %v228, %v240
    %v242 = vlaneseq
    %v243 = vshrl.u32 %v242, 7
    %v244 = vsub.s32 3, %v243
    %v245 = vrot.slane %v228, %v244
    %v378 = vunpack.c.l.b16 %v100
    %v379 = vunpack.c.h.b16 %v100
    %v380 = vunpack.c.l.b16 %v101
    %v381 = vunpack.c.h.b16 %v101
    %v382 = vunpack.c.l.b16 %v102
    %v383 = vunpack.c.h.b16 %v102
    %v384 = vunpack.c.l.b16 %v103
    %v385 = vunpack.c.h.b16 %v103
    %v386 = vunpack.c.l.b16 %v104
    %v387 = vunpack.c.h.b16 %v104
    %v388 = vunpack.c.l.b16 %v105
    %v389 = vunpack.c.h.b16 %v105
    %v390 = vunpack.c.l.b16 %v106
    %v391 = vunpack.c.h.b16 %v106
    %v392 = vunpack.c.l.b16 %v107
    %v393 = vunpack.c.h.b16 %v107
    %v394 = vunpack.c.l.b16 %v108
    %v395 = vunpack.c.h.b16 %v108
    %v396 = vunpack.c.l.b16 %v109
    %v397 = vunpack.c.h.b16 %v109
    %v398 = vunpack.c.l.b16 %v110
    %v399 = vunpack.c.h.b16 %v110
    %v400 = vunpack.c.l.b16 %v111
    %v401 = vunpack.c.h.b16 %v111
    %v402 = vunpack.c.l.b16 %v112
    %v403 = vunpack.c.h.b16 %v112
    %v404 = vunpack.c.l.b16 %v113
    %v405 = vunpack.c.h.b16 %v113
    %v406 = vunpack.c.l.b16 %v114
    %v407 = vunpack.c.h.b16 %v114
    %v408 = vunpack.c.l.b16 %v115
    %v409 = vunpack.c.h.b16 %v115
    %v410 = vunpack.c.l.b16 %v116
    %v411 = vunpack.c.h.b16 %v116
    %v412 = vunpack.c.l.b16 %v117
    %v413 = vunpack.c.h.b16 %v117
    %v414 = vunpack.c.l.b16 %v118
    %v415 = vunpack.c.h.b16 %v118
    %v416 = vunpack.c.l.b16 %v119
    %v417 = vunpack.c.h.b16 %v119
    %v418 = vunpack.c.l.b16 %v120
    %v419 = vunpack.c.h.b16 %v120
    %v420 = vunpack.c.l.b16 %v121
    %v421 = vunpack.c.h.b16 %v121
    %v422 = vunpack.c.l.b16 %v122
    %v423 = vunpack.c.h.b16 %v122
    %v424 = vunpack.c.l.b16 %v123
    %v425 = vunpack.c.h.b16 %v123
    %v426 = vunpack.c.l.b16 %v124
    %v427 = vunpack.c.h.b16 %v124
    %v428 = vunpack.c.l.b16 %v125
    %v429 = vunpack.c.h.b16 %v125
    %v430 = vunpack.c.l.b16 %v126
    %v431 = vunpack.c.h.b16 %v126
    %v432 = vunpack.c.l.b16 %v127
    %v433 = vunpack.c.h.b16 %v127
    %v434 = vunpack.c.l.b16 %v128
    %v435 = vunpack.c.h.b16 %v128
    %v436 = vunpack.c.l.b16 %v129
    %v437 = vunpack.c.h.b16 %v129
    %v438 = vunpack.c.l.b16 %v130
    %v439 = vunpack.c.h.b16 %v130
    %v440 = vunpack.c.l.b16 %v131
    %v441 = vunpack.c.h.b16 %v131
    %v442 = vunpack.c.l.b16 %v132
    %v443 = vunpack.c.h.b16 %v132
    %v444 = vunpack.c.l.b16 %v133
    %v445 = vunpack.c.h.b16 %v133
    %v446 = vunpack.c.l.b16 %v134
    %v447 = vunpack.c.h.b16 %v134
    %v448 = vunpack.c.l.b16 %v135
    %v449 = vunpack.c.h.b16 %v135
    %v450 = vunpack.c.l.b16 %v136
    %v451 = vunpack.c.h.b16 %v136
    %v452 = vunpack.c.l.b16 %v137
    %v453 = vunpack.c.h.b16 %v137
    %v454 = vunpack.c.l.b16 %v138
    %v455 = vunpack.c.h.b16 %v138
    %v456 = vunpack.c.l.b16 %v139
    %v457 = vunpack.c.h.b16 %v139
    %v458 = vunpack.c.l.b16 %v140
    %v459 = vunpack.c.h.b16 %v140
    %v460 = vunpack.c.l.b16 %v141
    %v461 = vunpack.c.h.b16 %v141
    %v462 = vunpack.c.l.b16 %v142
    %v463 = vunpack.c.h.b16 %v142
    %v464 = vunpack.c.l.b16 %v143
    %v465 = vunpack.c.h.b16 %v143
    %v466 = vunpack.c.l.b16 %v144
    %v467 = vunpack.c.h.b16 %v144
    %v468 = vunpack.c.l.b16 %v145
    %v469 = vunpack.c.h.b16 %v145
    %v470 = vunpack.c.l.b16 %v146
    %v471 = vunpack.c.h.b16 %v146
    %v472 = vunpack.c.l.b16 %v147
    %v473 = vunpack.c.h.b16 %v147
    %v474 = vunpack.c.l.b16 %v148
    %v475 = vunpack.c.h.b16 %v148
    %v476 = vunpack.c.l.b16 %v149
    %v477 = vunpack.c.h.b16 %v149
    %v478 = vunpack.c.l.b16 %v150
    %v479 = vunpack.c.h.b16 %v150
    %v480 = vunpack.c.l.b16 %v151
    %v481 = vunpack.c.h.b16 %v151
    %v482 = vunpack.c.l.b16 %v152
    %v483 = vunpack.c.h.b16 %v152
    %v484 = vunpack.c.l.b16 %v153
    %v485 = vunpack.c.h.b16 %v153
    %v486 = vunpack.c.l.b16 %v154
    %v487 = vunpack.c.h.b16 %v154
    %v488 = vunpack.c.l.b16 %v155
    %v489 = vunpack.c.h.b16 %v155
    %v490 = vunpack.c.l.b16 %v156
    %v491 = vunpack.c.h.b16 %v156
    %v492 = vunpack.c.l.b16 %v157
    %v493 = vunpack.c.h.b16 %v157
    %v494 = vunpack.c.l.b16 %v158
    %v495 = vunpack.c.h.b16 %v158
    %v496 = vunpack.c.l.b16 %v159
    %v497 = vunpack.c.h.b16 %v159
    %v498 = vunpack.c.l.b16 %v160
    %v499 = vunpack.c.h.b16 %v160
    %v500 = vunpack.c.l.b16 %v161
    %v501 = vunpack.c.h.b16 %v161
    %v502 = vunpack.c.l.b16 %v162
    %v503 = vunpack.c.h.b16 %v162
    %v504 = vunpack.c.l.b16 %v163
    %v505 = vunpack.c.h.b16 %v163
    %v506 = vunpack.c.l.b16 %v164
    %v507 = vunpack.c.h.b16 %v164
    %v508 = vunpack.c.l.b16 %v165
    %v509 = vunpack.c.h.b16 %v165
    %v510 = vunpack.c.l.b16 %v166
    %v511 = vunpack.c.h.b16 %v166
    %v512 = vunpack.c.l.b16 %v167
    %v513 = vunpack.c.h.b16 %v167
    %v514 = vunpack.c.l.b16 %v168
    %v515 = vunpack.c.h.b16 %v168
    %v516 = vunpack.c.l.b16 %v169
    %v517 = vunpack.c.h.b16 %v169
    %v518 = vunpack.c.l.b16 %v170
    %v519 = vunpack.c.h.b16 %v170
    %v520 = vunpack.c.l.b16 %v171
    %v521 = vunpack.c.h.b16 %v171
    %v522 = vunpack.c.l.b16 %v172
    %v523 = vunpack.c.h.b16 %v172
    %v524 = vunpack.c.l.b16 %v173
    %v525 = vunpack.c.h.b16 %v173
    %v526 = vunpack.c.l.b16 %v174
    %v527 = vunpack.c.h.b16 %v174
    %v528 = vunpack.c.l.b16 %v175
    %v529 = vunpack.c.h.b16 %v175
    %v530 = vunpack.c.l.b16 %v176
    %v531 = vunpack.c.h.b16 %v176
    %v532 = vunpack.c.l.b16 %v177
    %v533 = vunpack.c.h.b16 %v177
    %v534 = vunpack.c.l.b16 %v178
    %v535 = vunpack.c.h.b16 %v178
    %v536 = vunpack.c.l.b16 %v179
    %v537 = vunpack.c.h.b16 %v179
    %v538 = vunpack.c.l.b16 %v180
    %v539 = vunpack.c.h.b16 %v180
    %v540 = vunpack.c.l.b16 %v181
    %v541 = vunpack.c.h.b16 %v181
    %v542 = vunpack.c.l.b16 %v182
    %v543 = vunpack.c.h.b16 %v182
    %v544 = vunpack.c.l.b16 %v183
    %v545 = vunpack.c.h.b16 %v183
    %v546 = vunpack.c.l.b16 %v184
    %v547 = vunpack.c.h.b16 %v184
    %v548 = vunpack.c.l.b16 %v185
    %v549 = vunpack.c.h.b16 %v185
    %v550 = vunpack.c.l.b16 %v186
    %v551 = vunpack.c.h.b16 %v186
    %v552 = vunpack.c.l.b16 %v187
    %v553 = vunpack.c.h.b16 %v187
    %v554 = vunpack.c.l.b16 %v188
    %v555 = vunpack.c.h.b16 %v188
    %v556 = vunpack.c.l.b16 %v189
    %v557 = vunpack.c.h.b16 %v189
    %v558 = vunpack.c.l.b16 %v190
    %v559 = vunpack.c.h.b16 %v190
    %v560 = vunpack.c.l.b16 %v191
    %v561 = vunpack.c.h.b16 %v191
    %v562 = vunpack.c.l.b16 %v192
    %v563 = vunpack.c.h.b16 %v192
    %v564 = vunpack.c.l.b16 %v193
    %v565 = vunpack.c.h.b16 %v193
    %v566 = vunpack.c.l.b16 %v194
    %v567 = vunpack.c.h.b16 %v194
    %v568 = vunpack.c.l.b16 %v195
    %v569 = vunpack.c.h.b16 %v195
    %v570 = vunpack.c.l.b16 %v196
    %v571 = vunpack.c.h.b16 %v196
    %v572 = vunpack.c.l.b16 %v197
    %v573 = vunpack.c.h.b16 %v197
    %v574 = vunpack.c.l.b16 %v198
    %v575 = vunpack.c.h.b16 %v198
    %v576 = vunpack.c.l.b16 %v199
    %v577 = vunpack.c.h.b16 %v199
    %v578 = vunpack.c.l.b16 %v200
    %v579 = vunpack.c.h.b16 %v200
    %v580 = vunpack.c.l.b16 %v201
    %v581 = vunpack.c.h.b16 %v201
    %v582 = vunpack.c.l.b16 %v202
    %v583 = vunpack.c.h.b16 %v202
    %v584 = vunpack.c.l.b16 %v203
    %v585 = vunpack.c.h.b16 %v203
    %v586 = vunpack.c.l.b16 %v204
    %v587 = vunpack.c.h.b16 %v204
    %v588 = vunpack.c.l.b16 %v205
    %v589 = vunpack.c.h.b16 %v205
    %v590 = vunpack.c.l.b16 %v206
    %v591 = vunpack.c.h.b16 %v206
    %v592 = vunpack.c.l.b16 %v207
    %v593 = vunpack.c.h.b16 %v207
    %v594 = vunpack.c.l.b16 %v208
    %v595 = vunpack.c.h.b16 %v208
    %v596 = vunpack.c.l.b16 %v209
    %v597 = vunpack.c.h.b16 %v209
    %v598 = vunpack.c.l.b16 %v210
    %v599 = vunpack.c.h.b16 %v210
    %v600 = vunpack.c.l.b16 %v211
    %v601 = vunpack.c.h.b16 %v211
    %v602 = vunpack.c.l.b16 %v212
    %v603 = vunpack.c.h.b16 %v212
    %v604 = vunpack.c.l.b16 %v213
    %v605 = vunpack.c.h.b16 %v213
    %v606 = vunpack.c.l.b16 %v214
    %v607 = vunpack.c.h.b16 %v214
    %v608 = vunpack.c.l.b16 %v215
    %v609 = vunpack.c.h.b16 %v215
    %v610 = vunpack.c.l.b16 %v216
    %v611 = vunpack.c.h.b16 %v216
    %v612 = vunpack.c.l.b16 %v217
    %v613 = vunpack.c.h.b16 %v217
    %v614 = vunpack.c.l.b16 %v218
    %v615 = vunpack.c.h.b16 %v218
    %v616 = vunpack.c.l.b16 %v219
    %v617 = vunpack.c.h.b16 %v219
    %v618 = vunpack.c.l.b16 %v220
    %v619 = vunpack.c.h.b16 %v220
    %v620 = vunpack.c.l.b16 %v221
    %v621 = vunpack.c.h.b16 %v221
    %v622 = vunpack.c.l.b16 %v222
    %v623 = vunpack.c.h.b16 %v222
    %v624 = vunpack.c.l.b16 %v223
    %v625 = vunpack.c.h.b16 %v223
    %v626 = vunpack.c.l.b16 %v224
    %v627 = vunpack.c.h.b16 %v224
    %v628 = vunpack.c.l.b16 %v225
    %v629 = vunpack.c.h.b16 %v225
    %v630 = vunpack.c.l.b16 %v226
    %v631 = vunpack.c.h.b16 %v226
    %v632 = vunpack.c.l.b16 %v227
    %v633 = vunpack.c.h.b16 %v227
    %v634 = vpack.c.b16 %v382, %v378
    %v635 = vpack.c.b16 %v383, %v379
    %v636 = vpack.c.b16 %v384, %v380
    %v637 = vpack.c.b16 %v385, %v381
    %v638 = vpack.c.b16 %v390, %v386
    %v639 = vpack.c.b16 %v391, %v387
    %v640 = vpack.c.b16 %v392, %v388
    %v641 = vpack.c.b16 %v393, %v389
    %v642 = vpack.c.b16 %v398, %v394
    %v643 = vpack.c.b16 %v399, %v395
    %v644 = vpack.c.b16 %v400, %v396
    %v645 = vpack.c.b16 %v401, %v397
    %v646 = vpack.c.b16 %v406, %v402
    %v647 = vpack.c.b16 %v407, %v403
    %v648 = vpack.c.b16 %v408, %v404
    %v649 = vpack.c.b16 %v409, %v405
    %v650 = vpack.c.b16 %v414, %v410
    %v651 = vpack.c.b16 %v415, %v411
    %v652 = vpack.c.b16 %v416, %v412
    %v653 = vpack.c.b16 %v417, %v413
    %v654 = vpack.c.b16 %v422, %v418
    %v655 = vpack.c.b16 %v423, %v419
    %v656 = vpack.c.b16 %v424, %v420
    %v657 = vpack.c.b16 %v425, %v421
    %v658 = vpack.c.b16 %v430, %v426
    %v659 = vpack.c.b16 %v431, %v427
    %v660 = vpack.c.b16 %v432, %v428
    %v661 = vpack.c.b16 %v433, %v429
    %v662 = vpack.c.b16 %v438, %v434
    %v663 = vpack.c.b16 %v439, %v435
    %v664 = vpack.c.b16 %v440, %v436
    %v665 = vpack.c.b16 %v441, %v437
    %v666 = vpack.c.b16 %v446, %v442
    %v667 = vpack.c.b16 %v447, %v443
    %v668 = vpack.c.b16 %v448, %v444
    %v669 = vpack.c.b16 %v449, %v445
    %v670 = vpack.c.b16 %v454, %v450
    %v671 = vpack.c.b16 %v455, %v451
    %v672 = vpack.c.b16 %v456, %v452
    %v673 = vpack.c.b16 %v457, %v453
    %v674 = vpack.c.b16 %v462, %v458
    %v675 = vpack.c.b16 %v463, %v459
    %v676 = vpack.c.b16 %v464, %v460
    %v677 = vpack.c.b16 %v465, %v461
    %v678 = vpack.c.b16 %v470, %v466
    %v679 = vpack.c.b16 %v471, %v467
    %v680 = vpack.c.b16 %v472, %v468
    %v681 = vpack.c.b16 %v473, %v469
    %v682 = vpack.c.b16 %v478, %v474
    %v683 = vpack.c.b16 %v479, %v475
    %v684 = vpack.c.b16 %v480, %v476
    %v685 = vpack.c.b16 %v481, %v477
    %v686 = vpack.c.b16 %v486, %v482
    %v687 = vpack.c.b16 %v487, %v483
    %v688 = vpack.c.b16 %v488, %v484
    %v689 = vpack.c.b16 %v489, %v485
    %v690 = vpack.c.b16 %v494, %v490
    %v691 = vpack.c.b16 %v495, %v491
    %v692 = vpack.c.b16 %v496, %v492
    %v693 = vpack.c.b16 %v497, %v493
    %v694 = vpack.c.b16 %v502, %v498
    %v695 = vpack.c.b16 %v503, %v499
    %v696 = vpack.c.b16 %v504, %v500
    %v697 = vpack.c.b16 %v505, %v501
    %v698 = vpack.c.b16 %v510, %v506
    %v699 = vpack.c.b16 %v511, %v507
    %v700 = vpack.c.b16 %v512, %v508
    %v701 = vpack.c.b16 %v513, %v509
    %v702 = vpack.c.b16 %v518, %v514
    %v703 = vpack.c.b16 %v519, %v515
    %v704 = vpack.c.b16 %v520, %v516
    %v705 = vpack.c.b16 %v521, %v517
    %v706 = vpack.c.b16 %v526, %v522
    %v707 = vpack.c.b16 %v527, %v523
    %v708 = vpack.c.b16 %v528, %v524
    %v709 = vpack.c.b16 %v529, %v525
    %v710 = vpack.c.b16 %v534, %v530
    %v711 = vpack.c.b16 %v535, %v531
    %v712 = vpack.c.b16 %v536, %v532
    %v713 = vpack.c.b16 %v537, %v533
    %v714 = vpack.c.b16 %v542, %v538
    %v715 = vpack.c.b16 %v543, %v539
    %v716 = vpack.c.b16 %v544, %v540
    %v717 = vpack.c.b16 %v545, %v541
    %v718 = vpack.c.b16 %v550, %v546
    %v719 = vpack.c.b16 %v551, %v547
    %v720 = vpack.c.b16 %v552, %v548
    %v721 = vpack.c.b16 %v553, %v549
    %v722 = vpack.c.b16 %v558, %v554
    %v723 = vpack.c.b16 %v559, %v555
    %v724 = vpack.c.b16 %v560, %v556
    %v725 = vpack.c.b16 %v561, %v557
    %v726 = vpack.c.b16 %v566, %v562
    %v727 = vpack.c.b16 %v567, %v563
    %v728 = vpack.c.b16 %v568, %v564
    %v729 = vpack.c.b16 %v569, %v565
    %v730 = vpack.c.b16 %v574, %v570
    %v731 = vpack.c.b16 %v575, %v571
    %v732 = vpack.c.b16 %v576, %v572
    %v733 = vpack.c.b16 %v577, %v573
    %v734 = vpack.c.b16 %v582, %v578
    %v735 = vpack.c.b16 %v583, %v579
    %v736 = vpack.c.b16 %v584, %v580
    %v737 = vpack.c.b16 %v585, %v581
    %v738 = vpack.c.b16 %v590, %v586
    %v739 = vpack.c.b16 %v591, %v587
    %v740 = vpack.c.b16 %v592, %v588
    %v741 = vpack.c.b16 %v593, %v589
    %v742 = vpack.c.b16 %v598, %v594
    %v743 = vpack.c.b16 %v599, %v595
    %v744 = vpack.c.b16 %v600, %v596
    %v745 = vpack.c.b16 %v601, %v597
    %v746 = vpack.c.b16 %v606, %v602
    %v747 = vpack.c.b16 %v607, %v603
    %v748 = vpack.c.b16 %v608, %v604
    %v749 = vpack.c.b16 %v609, %v605
    %v750 = vpack.c.b16 %v614, %v610
    %v751 = vpack.c.b16 %v615, %v611
    %v752 = vpack.c.b16 %v616, %v612
    %v753 = vpack.c.b16 %v617, %v613
    %v754 = vpack.c.b16 %v622, %v618
    %v755 = vpack.c.b16 %v623, %v619
    %v756 = vpack.c.b16 %v624, %v620
    %v757 = vpack.c.b16 %v625, %v621
    %v758 = vpack.c.b16 %v630, %v626
    %v759 = vpack.c.b16 %v631, %v627
    %v760 = vpack.c.b16 %v632, %v628
    %v761 = vpack.c.b16 %v633, %v629
    %890 = vmatprep.subr.bf16.mxu0 %v663
    %891 = vmatpush1.bf16.msra.mxu0 %v662
    %892 = vmatprep.subr.bf16.mxu0 %v659
    %893 = vmatpush1.bf16.msra.mxu0 %v658
    %894 = vmatprep.subr.bf16.mxu0 %v655
    %895 = vmatpush1.bf16.msra.mxu0 %v654
    %896 = vmatprep.subr.bf16.mxu0 %v651
    %897 = vmatpush1.bf16.msra.mxu0 %v650
    %898 = vmatprep.subr.bf16.mxu0 %v647
    %899 = vmatpush1.bf16.msra.mxu0 %v646
    %900 = vmatprep.subr.bf16.mxu0 %v643
    %901 = vmatpush1.bf16.msra.mxu0 %v642
    %902 = vmatprep.subr.bf16.mxu0 %v639
    %903 = vmatpush1.bf16.msra.mxu0 %v638
    %904 = vmatprep.subr.bf16.mxu0 %v635
    %905 = vmatpush1.bf16.msra.mxu0 %v634
    %906 = vmatprep.subr.bf16.mxu0 %v695
    %907 = vmatpush2.bf16.msra.mxu0 %v694
    %908 = vmatprep.subr.bf16.mxu0 %v691
    %909 = vmatpush2.bf16.msra.mxu0 %v690
    %910 = vmatprep.subr.bf16.mxu0 %v687
    %911 = vmatpush2.bf16.msra.mxu0 %v686
    %912 = vmatprep.subr.bf16.mxu0 %v683
    %913 = vmatpush2.bf16.msra.mxu0 %v682
    %914 = vmatprep.subr.bf16.mxu0 %v679
    %915 = vmatpush2.bf16.msra.mxu0 %v678
    %916 = vmatprep.subr.bf16.mxu0 %v675
    %917 = vmatpush2.bf16.msra.mxu0 %v674
    %918 = vmatprep.subr.bf16.mxu0 %v671
    %919 = vmatpush2.bf16.msra.mxu0 %v670
    %920 = vmatprep.subr.bf16.mxu0 %v667
    %921 = vmatpush2.bf16.msra.mxu0 %v666
    %922 = vmatprep.mubr.bf16.mxu0 %v97
    %923 = vmatmul.mubr.bf16.gmra.mxu0 %v96
    %v924 = vpop.f32.mrf.mxu0
    %v925 = vadd.f32 %v233, %v924
    %v926 = vpop.f32.mrf.mxu0
    %v927 = vadd.f32 %v237, %v926
    %v928 = vpop.f32.mrf.mxu0
    %v929 = vpop.f32.mrf.mxu0
    %930 = vdwg.mxu0
    %931 = vmatprep.subr.bf16.mxu0 %v727
    %932 = vmatpush1.bf16.msra.mxu0 %v726
    %933 = vmatprep.subr.bf16.mxu0 %v723
    %934 = vmatpush1.bf16.msra.mxu0 %v722
    %935 = vmatprep.subr.bf16.mxu0 %v719
    %936 = vmatpush1.bf16.msra.mxu0 %v718
    %937 = vmatprep.subr.bf16.mxu0 %v715
    %938 = vmatpush1.bf16.msra.mxu0 %v714
    %939 = vmatprep.subr.bf16.mxu0 %v711
    %940 = vmatpush1.bf16.msra.mxu0 %v710
    %941 = vmatprep.subr.bf16.mxu0 %v707
    %942 = vmatpush1.bf16.msra.mxu0 %v706
    %943 = vmatprep.subr.bf16.mxu0 %v703
    %944 = vmatpush1.bf16.msra.mxu0 %v702
    %945 = vmatprep.subr.bf16.mxu0 %v699
    %946 = vmatpush1.bf16.msra.mxu0 %v698
    %947 = vmatprep.subr.bf16.mxu0 %v759
    %948 = vmatpush2.bf16.msra.mxu0 %v758
    %949 = vmatprep.subr.bf16.mxu0 %v755
    %950 = vmatpush2.bf16.msra.mxu0 %v754
    %951 = vmatprep.subr.bf16.mxu0 %v751
    %952 = vmatpush2.bf16.msra.mxu0 %v750
    %953 = vmatprep.subr.bf16.mxu0 %v747
    %954 = vmatpush2.bf16.msra.mxu0 %v746
    %955 = vmatprep.subr.bf16.mxu0 %v743
    %956 = vmatpush2.bf16.msra.mxu0 %v742
    %957 = vmatprep.subr.bf16.mxu0 %v739
    %958 = vmatpush2.bf16.msra.mxu0 %v738
    %959 = vmatprep.subr.bf16.mxu0 %v735
    %960 = vmatpush2.bf16.msra.mxu0 %v734
    %961 = vmatprep.subr.bf16.mxu0 %v731
    %962 = vmatpush2.bf16.msra.mxu0 %v730
    %963 = vmatprep.mubr.bf16.mxu0 %v99
    %964 = vmatmul.mubr.bf16.gmra.mxu0 %v98
    %v965 = vpop.f32.mrf.mxu0
    %v966 = vadd.f32 %v925, %v965
    %v967 = vpop.f32.mrf.mxu0
    %v968 = vadd.f32 %v927, %v967
    %v969 = vpop.f32.mrf.mxu0
    %v970 = vpop.f32.mrf.mxu0
    %971 = vdwg.mxu0
    %972 = vmatprep.subr.bf16.mxu0 %v665
    %973 = vmatpush1.bf16.msra.mxu0 %v664
    %974 = vmatprep.subr.bf16.mxu0 %v661
    %975 = vmatpush1.bf16.msra.mxu0 %v660
    %976 = vmatprep.subr.bf16.mxu0 %v657
    %977 = vmatpush1.bf16.msra.mxu0 %v656
    %978 = vmatprep.subr.bf16.mxu0 %v653
    %979 = vmatpush1.bf16.msra.mxu0 %v652
    %980 = vmatprep.subr.bf16.mxu0 %v649
    %981 = vmatpush1.bf16.msra.mxu0 %v648
    %982 = vmatprep.subr.bf16.mxu0 %v645
    %983 = vmatpush1.bf16.msra.mxu0 %v644
    %984 = vmatprep.subr.bf16.mxu0 %v641
    %985 = vmatpush1.bf16.msra.mxu0 %v640
    %986 = vmatprep.subr.bf16.mxu0 %v637
    %987 = vmatpush1.bf16.msra.mxu0 %v636
    %988 = vmatprep.subr.bf16.mxu0 %v697
    %989 = vmatpush2.bf16.msra.mxu0 %v696
    %990 = vmatprep.subr.bf16.mxu0 %v693
    %991 = vmatpush2.bf16.msra.mxu0 %v692
    %992 = vmatprep.subr.bf16.mxu0 %v689
    %993 = vmatpush2.bf16.msra.mxu0 %v688
    %994 = vmatprep.subr.bf16.mxu0 %v685
    %995 = vmatpush2.bf16.msra.mxu0 %v684
    %996 = vmatprep.subr.bf16.mxu0 %v681
    %997 = vmatpush2.bf16.msra.mxu0 %v680
    %998 = vmatprep.subr.bf16.mxu0 %v677
    %999 = vmatpush2.bf16.msra.mxu0 %v676
    %1000 = vmatprep.subr.bf16.mxu0 %v673
    %1001 = vmatpush2.bf16.msra.mxu0 %v672
    %1002 = vmatprep.subr.bf16.mxu0 %v669
    %1003 = vmatpush2.bf16.msra.mxu0 %v668
    %1004 = vmatprep.mubr.bf16.mxu0 %v97
    %1005 = vmatmul.mubr.bf16.gmra.mxu0 %v96
    %v1006 = vpop.f32.mrf.mxu0
    %v1007 = vadd.f32 %v241, %v1006
    %v1008 = vpop.f32.mrf.mxu0
    %v1009 = vadd.f32 %v245, %v1008
    %v1010 = vpop.f32.mrf.mxu0
    %v1011 = vpop.f32.mrf.mxu0
    %1012 = vdwg.mxu0
    %1013 = vmatprep.subr.bf16.mxu0 %v729
    %1014 = vmatpush1.bf16.msra.mxu0 %v728
    %1015 = vmatprep.subr.bf16.mxu0 %v725
    %1016 = vmatpush1.bf16.msra.mxu0 %v724
    %1017 = vmatprep.subr.bf16.mxu0 %v721
    %1018 = vmatpush1.bf16.msra.mxu0 %v720
    %1019 = vmatprep.subr.bf16.mxu0 %v717
    %1020 = vmatpush1.bf16.msra.mxu0 %v716
    %1021 = vmatprep.subr.bf16.mxu0 %v713
    %1022 = vmatpush1.bf16.msra.mxu0 %v712
    %1023 = vmatprep.subr.bf16.mxu0 %v709
    %1024 = vmatpush1.bf16.msra.mxu0 %v708
    %1025 = vmatprep.subr.bf16.mxu0 %v705
    %1026 = vmatpush1.bf16.msra.mxu0 %v704
    %1027 = vmatprep.subr.bf16.mxu0 %v701
    %1028 = vmatpush1.bf16.msra.mxu0 %v700
    %1029 = vmatprep.subr.bf16.mxu0 %v761
    %1030 = vmatpush2.bf16.msra.mxu0 %v760
    %1031 = vmatprep.subr.bf16.mxu0 %v757
    %1032 = vmatpush2.bf16.msra.mxu0 %v756
    %1033 = vmatprep.subr.bf16.mxu0 %v753
    %1034 = vmatpush2.bf16.msra.mxu0 %v752
    %1035 = vmatprep.subr.bf16.mxu0 %v749
    %1036 = vmatpush2.bf16.msra.mxu0 %v748
    %1037 = vmatprep.subr.bf16.mxu0 %v745
    %1038 = vmatpush2.bf16.msra.mxu0 %v744
    %1039 = vmatprep.subr.bf16.mxu0 %v741
    %1040 = vmatpush2.bf16.msra.mxu0 %v740
    %1041 = vmatprep.subr.bf16.mxu0 %v737
    %1042 = vmatpush2.bf16.msra.mxu0 %v736
    %1043 = vmatprep.subr.bf16.mxu0 %v733
    %1044 = vmatpush2.bf16.msra.mxu0 %v732
    %1045 = vmatprep.mubr.bf16.mxu0 %v99
    %1046 = vmatmul.mubr.bf16.gmra.mxu0 %v98
    %v1047 = vpop.f32.mrf.mxu0
    %v1048 = vadd.f32 %v1007, %v1047
    %v1049 = vpop.f32.mrf.mxu0
    %v1050 = vadd.f32 %v1009, %v1049
    %v1051 = vpop.f32.mrf.mxu0
    %v1052 = vpop.f32.mrf.mxu0
    %1053 = vdwg.mxu0
    %v1054 = vmax.f32 %v966, 0.0
    %v1055 = vmax.f32 %v968, 0.0
    %v1056 = vmax.f32 %v1048, 0.0
    %v1057 = vmax.f32 %v1050, 0.0
    %v1058 = vpack.c.bf16 %v1054, %v1054
    %v1059 = vpack.c.bf16 %v1055, %v1055
    %v1060 = vpack.c.bf16 %v1056, %v1056
    %v1061 = vpack.c.bf16 %v1057, %v1057
    %v1062 = vld [vmem:[#allocation8] sm:$0xff]
    %v1063 = vld [vmem:[#allocation8 + $0x8] sm:$0xff]
    %v1064 = vld [vmem:[#allocation8 + $0x10] sm:$0xff]
    %v1065 = vld [vmem:[#allocation8 + $0x18] sm:$0xff]
    %v1066 = vld [vmem:[#allocation8 + $0x20] sm:$0xff]
    %v1067 = vld [vmem:[#allocation8 + $0x28] sm:$0xff]
    %v1068 = vld [vmem:[#allocation8 + $0x30] sm:$0xff]
    %v1069 = vld [vmem:[#allocation8 + $0x38] sm:$0xff]
    %v1070 = vld [vmem:[#allocation8 + $0x40] sm:$0xff]
    %v1071 = vld [vmem:[#allocation8 + $0x48] sm:$0xff]
    %v1072 = vld [vmem:[#allocation8 + $0x50] sm:$0xff]
    %v1073 = vld [vmem:[#allocation8 + $0x58] sm:$0xff]
    %v1074 = vld [vmem:[#allocation8 + $0x60] sm:$0xff]
    %v1075 = vld [vmem:[#allocation8 + $0x68] sm:$0xff]
    %v1076 = vld [vmem:[#allocation8 + $0x70] sm:$0xff]
    %v1077 = vld [vmem:[#allocation8 + $0x78] sm:$0xff]
    %v1078 = vld [vmem:[#allocation8 + $0x80] sm:$0xff]
    %v1079 = vld [vmem:[#allocation8 + $0x88] sm:$0xff]
    %v1080 = vld [vmem:[#allocation8 + $0x90] sm:$0xff]
    %v1081 = vld [vmem:[#allocation8 + $0x98] sm:$0xff]
    %v1082 = vld [vmem:[#allocation8 + $0xa0] sm:$0xff]
    %v1083 = vld [vmem:[#allocation8 + $0xa8] sm:$0xff]
    %v1084 = vld [vmem:[#allocation8 + $0xb0] sm:$0xff]
    %v1085 = vld [vmem:[#allocation8 + $0xb8] sm:$0xff]
    %v1086 = vld [vmem:[#allocation8 + $0xc0] sm:$0xff]
    %v1087 = vld [vmem:[#allocation8 + $0xc8] sm:$0xff]
    %v1088 = vld [vmem:[#allocation8 + $0xd0] sm:$0xff]
    %v1089 = vld [vmem:[#allocation8 + $0xd8] sm:$0xff]
    %v1090 = vld [vmem:[#allocation8 + $0xe0] sm:$0xff]
    %v1091 = vld [vmem:[#allocation8 + $0xe8] sm:$0xff]
    %v1092 = vld [vmem:[#allocation8 + $0xf0] sm:$0xff]
    %v1093 = vld [vmem:[#allocation8 + $0xf8] sm:$0xff]
    %v1094 = vld [vmem:[#allocation8 + $0x100] sm:$0xff]
    %v1095 = vld [vmem:[#allocation8 + $0x108] sm:$0xff]
    %v1096 = vld [vmem:[#allocation8 + $0x110] sm:$0xff]
    %v1097 = vld [vmem:[#allocation8 + $0x118] sm:$0xff]
    %v1098 = vld [vmem:[#allocation8 + $0x120] sm:$0xff]
    %v1099 = vld [vmem:[#allocation8 + $0x128] sm:$0xff]
    %v1100 = vld [vmem:[#allocation8 + $0x130] sm:$0xff]
    %v1101 = vld [vmem:[#allocation8 + $0x138] sm:$0xff]
    %v1102 = vld [vmem:[#allocation8 + $0x140] sm:$0xff]
    %v1103 = vld [vmem:[#allocation8 + $0x148] sm:$0xff]
    %v1104 = vld [vmem:[#allocation8 + $0x150] sm:$0xff]
    %v1105 = vld [vmem:[#allocation8 + $0x158] sm:$0xff]
    %v1106 = vld [vmem:[#allocation8 + $0x160] sm:$0xff]
    %v1107 = vld [vmem:[#allocation8 + $0x168] sm:$0xff]
    %v1108 = vld [vmem:[#allocation8 + $0x170] sm:$0xff]
    %v1109 = vld [vmem:[#allocation8 + $0x178] sm:$0xff]
    %v1110 = vld [vmem:[#allocation8 + $0x180] sm:$0xff]
    %v1111 = vld [vmem:[#allocation8 + $0x188] sm:$0xff]
    %v1112 = vld [vmem:[#allocation8 + $0x190] sm:$0xff]
    %v1113 = vld [vmem:[#allocation8 + $0x198] sm:$0xff]
    %v1114 = vld [vmem:[#allocation8 + $0x1a0] sm:$0xff]
    %v1115 = vld [vmem:[#allocation8 + $0x1a8] sm:$0xff]
    %v1116 = vld [vmem:[#allocation8 + $0x1b0] sm:$0xff]
    %v1117 = vld [vmem:[#allocation8 + $0x1b8] sm:$0xff]
    %v1118 = vld [vmem:[#allocation8 + $0x1c0] sm:$0xff]
    %v1119 = vld [vmem:[#allocation8 + $0x1c8] sm:$0xff]
    %v1120 = vld [vmem:[#allocation8 + $0x1d0] sm:$0xff]
    %v1121 = vld [vmem:[#allocation8 + $0x1d8] sm:$0xff]
    %v1122 = vld [vmem:[#allocation8 + $0x1e0] sm:$0xff]
    %v1123 = vld [vmem:[#allocation8 + $0x1e8] sm:$0xff]
    %v1124 = vld [vmem:[#allocation8 + $0x1f0] sm:$0xff]
    %v1125 = vld [vmem:[#allocation8 + $0x1f8] sm:$0xff]
    %v1126 = vld [vmem:[#allocation8 + $0x200] sm:$0xff]
    %v1127 = vld [vmem:[#allocation8 + $0x208] sm:$0xff]
    %v1128 = vld [vmem:[#allocation8 + $0x210] sm:$0xff]
    %v1129 = vld [vmem:[#allocation8 + $0x218] sm:$0xff]
    %v1130 = vld [vmem:[#allocation8 + $0x220] sm:$0xff]
    %v1131 = vld [vmem:[#allocation8 + $0x228] sm:$0xff]
    %v1132 = vld [vmem:[#allocation8 + $0x230] sm:$0xff]
    %v1133 = vld [vmem:[#allocation8 + $0x238] sm:$0xff]
    %v1134 = vld [vmem:[#allocation8 + $0x240] sm:$0xff]
    %v1135 = vld [vmem:[#allocation8 + $0x248] sm:$0xff]
    %v1136 = vld [vmem:[#allocation8 + $0x250] sm:$0xff]
    %v1137 = vld [vmem:[#allocation8 + $0x258] sm:$0xff]
    %v1138 = vld [vmem:[#allocation8 + $0x260] sm:$0xff]
    %v1139 = vld [vmem:[#allocation8 + $0x268] sm:$0xff]
    %v1140 = vld [vmem:[#allocation8 + $0x270] sm:$0xff]
    %v1141 = vld [vmem:[#allocation8 + $0x278] sm:$0xff]
    %v1142 = vld [vmem:[#allocation8 + $0x280] sm:$0xff]
    %v1143 = vld [vmem:[#allocation8 + $0x288] sm:$0xff]
    %v1144 = vld [vmem:[#allocation8 + $0x290] sm:$0xff]
    %v1145 = vld [vmem:[#allocation8 + $0x298] sm:$0xff]
    %v1146 = vld [vmem:[#allocation8 + $0x2a0] sm:$0xff]
    %v1147 = vld [vmem:[#allocation8 + $0x2a8] sm:$0xff]
    %v1148 = vld [vmem:[#allocation8 + $0x2b0] sm:$0xff]
    %v1149 = vld [vmem:[#allocation8 + $0x2b8] sm:$0xff]
    %v1150 = vld [vmem:[#allocation8 + $0x2c0] sm:$0xff]
    %v1151 = vld [vmem:[#allocation8 + $0x2c8] sm:$0xff]
    %v1152 = vld [vmem:[#allocation8 + $0x2d0] sm:$0xff]
    %v1153 = vld [vmem:[#allocation8 + $0x2d8] sm:$0xff]
    %v1154 = vld [vmem:[#allocation8 + $0x2e0] sm:$0xff]
    %v1155 = vld [vmem:[#allocation8 + $0x2e8] sm:$0xff]
    %v1156 = vld [vmem:[#allocation8 + $0x2f0] sm:$0xff]
    %v1157 = vld [vmem:[#allocation8 + $0x2f8] sm:$0xff]
    %v1158 = vld [vmem:[#allocation8 + $0x300] sm:$0xff]
    %v1159 = vld [vmem:[#allocation8 + $0x308] sm:$0xff]
    %v1160 = vld [vmem:[#allocation8 + $0x310] sm:$0xff]
    %v1161 = vld [vmem:[#allocation8 + $0x318] sm:$0xff]
    %v1162 = vld [vmem:[#allocation8 + $0x320] sm:$0xff]
    %v1163 = vld [vmem:[#allocation8 + $0x328] sm:$0xff]
    %v1164 = vld [vmem:[#allocation8 + $0x330] sm:$0xff]
    %v1165 = vld [vmem:[#allocation8 + $0x338] sm:$0xff]
    %v1166 = vld [vmem:[#allocation8 + $0x340] sm:$0xff]
    %v1167 = vld [vmem:[#allocation8 + $0x348] sm:$0xff]
    %v1168 = vld [vmem:[#allocation8 + $0x350] sm:$0xff]
    %v1169 = vld [vmem:[#allocation8 + $0x358] sm:$0xff]
    %v1170 = vld [vmem:[#allocation8 + $0x360] sm:$0xff]
    %v1171 = vld [vmem:[#allocation8 + $0x368] sm:$0xff]
    %v1172 = vld [vmem:[#allocation8 + $0x370] sm:$0xff]
    %v1173 = vld [vmem:[#allocation8 + $0x378] sm:$0xff]
    %v1174 = vld [vmem:[#allocation8 + $0x380] sm:$0xff]
    %v1175 = vld [vmem:[#allocation8 + $0x388] sm:$0xff]
    %v1176 = vld [vmem:[#allocation8 + $0x390] sm:$0xff]
    %v1177 = vld [vmem:[#allocation8 + $0x398] sm:$0xff]
    %v1178 = vld [vmem:[#allocation8 + $0x3a0] sm:$0xff]
    %v1179 = vld [vmem:[#allocation8 + $0x3a8] sm:$0xff]
    %v1180 = vld [vmem:[#allocation8 + $0x3b0] sm:$0xff]
    %v1181 = vld [vmem:[#allocation8 + $0x3b8] sm:$0xff]
    %v1182 = vld [vmem:[#allocation8 + $0x3c0] sm:$0xff]
    %v1183 = vld [vmem:[#allocation8 + $0x3c8] sm:$0xff]
    %v1184 = vld [vmem:[#allocation8 + $0x3d0] sm:$0xff]
    %v1185 = vld [vmem:[#allocation8 + $0x3d8] sm:$0xff]
    %v1186 = vld [vmem:[#allocation8 + $0x3e0] sm:$0xff]
    %v1187 = vld [vmem:[#allocation8 + $0x3e8] sm:$0xff]
    %v1188 = vld [vmem:[#allocation8 + $0x3f0] sm:$0xff]
    %v1189 = vld [vmem:[#allocation8 + $0x3f8] sm:$0xff]
    %v1190 = vld [vmem:[%s4] sm:$0xf]
    %v1192 = vlaneseq
    %v1193 = vshrl.u32 %v1192, 7
    %v1194 = vsub.s32 0, %v1193
    %v1195 = vrot.slane %v1190, %v1194
    %v1196 = vlaneseq
    %v1197 = vshrl.u32 %v1196, 7
    %v1198 = vsub.s32 1, %v1197
    %v1199 = vrot.slane %v1190, %v1198
    %v1200 = vlaneseq
    %v1201 = vshrl.u32 %v1200, 7
    %v1202 = vsub.s32 2, %v1201
    %v1203 = vrot.slane %v1190, %v1202
    %v1204 = vlaneseq
    %v1205 = vshrl.u32 %v1204, 7
    %v1206 = vsub.s32 3, %v1205
    %v1207 = vrot.slane %v1190, %v1206
    %v1340 = vunpack.c.l.b16 %v1062
    %v1341 = vunpack.c.h.b16 %v1062
    %v1342 = vunpack.c.l.b16 %v1063
    %v1343 = vunpack.c.h.b16 %v1063
    %v1344 = vunpack.c.l.b16 %v1064
    %v1345 = vunpack.c.h.b16 %v1064
    %v1346 = vunpack.c.l.b16 %v1065
    %v1347 = vunpack.c.h.b16 %v1065
    %v1348 = vunpack.c.l.b16 %v1066
    %v1349 = vunpack.c.h.b16 %v1066
    %v1350 = vunpack.c.l.b16 %v1067
    %v1351 = vunpack.c.h.b16 %v1067
    %v1352 = vunpack.c.l.b16 %v1068
    %v1353 = vunpack.c.h.b16 %v1068
    %v1354 = vunpack.c.l.b16 %v1069
    %v1355 = vunpack.c.h.b16 %v1069
    %v1356 = vunpack.c.l.b16 %v1070
    %v1357 = vunpack.c.h.b16 %v1070
    %v1358 = vunpack.c.l.b16 %v1071
    %v1359 = vunpack.c.h.b16 %v1071
    %v1360 = vunpack.c.l.b16 %v1072
    %v1361 = vunpack.c.h.b16 %v1072
    %v1362 = vunpack.c.l.b16 %v1073
    %v1363 = vunpack.c.h.b16 %v1073
    %v1364 = vunpack.c.l.b16 %v1074
    %v1365 = vunpack.c.h.b16 %v1074
    %v1366 = vunpack.c.l.b16 %v1075
    %v1367 = vunpack.c.h.b16 %v1075
    %v1368 = vunpack.c.l.b16 %v1076
    %v1369 = vunpack.c.h.b16 %v1076
    %v1370 = vunpack.c.l.b16 %v1077
    %v1371 = vunpack.c.h.b16 %v1077
    %v1372 = vunpack.c.l.b16 %v1078
    %v1373 = vunpack.c.h.b16 %v1078
    %v1374 = vunpack.c.l.b16 %v1079
    %v1375 = vunpack.c.h.b16 %v1079
    %v1376 = vunpack.c.l.b16 %v1080
    %v1377 = vunpack.c.h.b16 %v1080
    %v1378 = vunpack.c.l.b16 %v1081
    %v1379 = vunpack.c.h.b16 %v1081
    %v1380 = vunpack.c.l.b16 %v1082
    %v1381 = vunpack.c.h.b16 %v1082
    %v1382 = vunpack.c.l.b16 %v1083
    %v1383 = vunpack.c.h.b16 %v1083
    %v1384 = vunpack.c.l.b16 %v1084
    %v1385 = vunpack.c.h.b16 %v1084
    %v1386 = vunpack.c.l.b16 %v1085
    %v1387 = vunpack.c.h.b16 %v1085
    %v1388 = vunpack.c.l.b16 %v1086
    %v1389 = vunpack.c.h.b16 %v1086
    %v1390 = vunpack.c.l.b16 %v1087
    %v1391 = vunpack.c.h.b16 %v1087
    %v1392 = vunpack.c.l.b16 %v1088
    %v1393 = vunpack.c.h.b16 %v1088
    %v1394 = vunpack.c.l.b16 %v1089
    %v1395 = vunpack.c.h.b16 %v1089
    %v1396 = vunpack.c.l.b16 %v1090
    %v1397 = vunpack.c.h.b16 %v1090
    %v1398 = vunpack.c.l.b16 %v1091
    %v1399 = vunpack.c.h.b16 %v1091
    %v1400 = vunpack.c.l.b16 %v1092
    %v1401 = vunpack.c.h.b16 %v1092
    %v1402 = vunpack.c.l.b16 %v1093
    %v1403 = vunpack.c.h.b16 %v1093
    %v1404 = vunpack.c.l.b16 %v1094
    %v1405 = vunpack.c.h.b16 %v1094
    %v1406 = vunpack.c.l.b16 %v1095
    %v1407 = vunpack.c.h.b16 %v1095
    %v1408 = vunpack.c.l.b16 %v1096
    %v1409 = vunpack.c.h.b16 %v1096
    %v1410 = vunpack.c.l.b16 %v1097
    %v1411 = vunpack.c.h.b16 %v1097
    %v1412 = vunpack.c.l.b16 %v1098
    %v1413 = vunpack.c.h.b16 %v1098
    %v1414 = vunpack.c.l.b16 %v1099
    %v1415 = vunpack.c.h.b16 %v1099
    %v1416 = vunpack.c.l.b16 %v1100
    %v1417 = vunpack.c.h.b16 %v1100
    %v1418 = vunpack.c.l.b16 %v1101
    %v1419 = vunpack.c.h.b16 %v1101
    %v1420 = vunpack.c.l.b16 %v1102
    %v1421 = vunpack.c.h.b16 %v1102
    %v1422 = vunpack.c.l.b16 %v1103
    %v1423 = vunpack.c.h.b16 %v1103
    %v1424 = vunpack.c.l.b16 %v1104
    %v1425 = vunpack.c.h.b16 %v1104
    %v1426 = vunpack.c.l.b16 %v1105
    %v1427 = vunpack.c.h.b16 %v1105
    %v1428 = vunpack.c.l.b16 %v1106
    %v1429 = vunpack.c.h.b16 %v1106
    %v1430 = vunpack.c.l.b16 %v1107
    %v1431 = vunpack.c.h.b16 %v1107
    %v1432 = vunpack.c.l.b16 %v1108
    %v1433 = vunpack.c.h.b16 %v1108
    %v1434 = vunpack.c.l.b16 %v1109
    %v1435 = vunpack.c.h.b16 %v1109
    %v1436 = vunpack.c.l.b16 %v1110
    %v1437 = vunpack.c.h.b16 %v1110
    %v1438 = vunpack.c.l.b16 %v1111
    %v1439 = vunpack.c.h.b16 %v1111
    %v1440 = vunpack.c.l.b16 %v1112
    %v1441 = vunpack.c.h.b16 %v1112
    %v1442 = vunpack.c.l.b16 %v1113
    %v1443 = vunpack.c.h.b16 %v1113
    %v1444 = vunpack.c.l.b16 %v1114
    %v1445 = vunpack.c.h.b16 %v1114
    %v1446 = vunpack.c.l.b16 %v1115
    %v1447 = vunpack.c.h.b16 %v1115
    %v1448 = vunpack.c.l.b16 %v1116
    %v1449 = vunpack.c.h.b16 %v1116
    %v1450 = vunpack.c.l.b16 %v1117
    %v1451 = vunpack.c.h.b16 %v1117
    %v1452 = vunpack.c.l.b16 %v1118
    %v1453 = vunpack.c.h.b16 %v1118
    %v1454 = vunpack.c.l.b16 %v1119
    %v1455 = vunpack.c.h.b16 %v1119
    %v1456 = vunpack.c.l.b16 %v1120
    %v1457 = vunpack.c.h.b16 %v1120
    %v1458 = vunpack.c.l.b16 %v1121
    %v1459 = vunpack.c.h.b16 %v1121
    %v1460 = vunpack.c.l.b16 %v1122
    %v1461 = vunpack.c.h.b16 %v1122
    %v1462 = vunpack.c.l.b16 %v1123
    %v1463 = vunpack.c.h.b16 %v1123
    %v1464 = vunpack.c.l.b16 %v1124
    %v1465 = vunpack.c.h.b16 %v1124
    %v1466 = vunpack.c.l.b16 %v1125
    %v1467 = vunpack.c.h.b16 %v1125
    %v1468 = vunpack.c.l.b16 %v1126
    %v1469 = vunpack.c.h.b16 %v1126
    %v1470 = vunpack.c.l.b16 %v1127
    %v1471 = vunpack.c.h.b16 %v1127
    %v1472 = vunpack.c.l.b16 %v1128
    %v1473 = vunpack.c.h.b16 %v1128
    %v1474 = vunpack.c.l.b16 %v1129
    %v1475 = vunpack.c.h.b16 %v1129
    %v1476 = vunpack.c.l.b16 %v1130
    %v1477 = vunpack.c.h.b16 %v1130
    %v1478 = vunpack.c.l.b16 %v1131
    %v1479 = vunpack.c.h.b16 %v1131
    %v1480 = vunpack.c.l.b16 %v1132
    %v1481 = vunpack.c.h.b16 %v1132
    %v1482 = vunpack.c.l.b16 %v1133
    %v1483 = vunpack.c.h.b16 %v1133
    %v1484 = vunpack.c.l.b16 %v1134
    %v1485 = vunpack.c.h.b16 %v1134
    %v1486 = vunpack.c.l.b16 %v1135
    %v1487 = vunpack.c.h.b16 %v1135
    %v1488 = vunpack.c.l.b16 %v1136
    %v1489 = vunpack.c.h.b16 %v1136
    %v1490 = vunpack.c.l.b16 %v1137
    %v1491 = vunpack.c.h.b16 %v1137
    %v1492 = vunpack.c.l.b16 %v1138
    %v1493 = vunpack.c.h.b16 %v1138
    %v1494 = vunpack.c.l.b16 %v1139
    %v1495 = vunpack.c.h.b16 %v1139
    %v1496 = vunpack.c.l.b16 %v1140
    %v1497 = vunpack.c.h.b16 %v1140
    %v1498 = vunpack.c.l.b16 %v1141
    %v1499 = vunpack.c.h.b16 %v1141
    %v1500 = vunpack.c.l.b16 %v1142
    %v1501 = vunpack.c.h.b16 %v1142
    %v1502 = vunpack.c.l.b16 %v1143
    %v1503 = vunpack.c.h.b16 %v1143
    %v1504 = vunpack.c.l.b16 %v1144
    %v1505 = vunpack.c.h.b16 %v1144
    %v1506 = vunpack.c.l.b16 %v1145
    %v1507 = vunpack.c.h.b16 %v1145
    %v1508 = vunpack.c.l.b16 %v1146
    %v1509 = vunpack.c.h.b16 %v1146
    %v1510 = vunpack.c.l.b16 %v1147
    %v1511 = vunpack.c.h.b16 %v1147
    %v1512 = vunpack.c.l.b16 %v1148
    %v1513 = vunpack.c.h.b16 %v1148
    %v1514 = vunpack.c.l.b16 %v1149
    %v1515 = vunpack.c.h.b16 %v1149
    %v1516 = vunpack.c.l.b16 %v1150
    %v1517 = vunpack.c.h.b16 %v1150
    %v1518 = vunpack.c.l.b16 %v1151
    %v1519 = vunpack.c.h.b16 %v1151
    %v1520 = vunpack.c.l.b16 %v1152
    %v1521 = vunpack.c.h.b16 %v1152
    %v1522 = vunpack.c.l.b16 %v1153
    %v1523 = vunpack.c.h.b16 %v1153
    %v1524 = vunpack.c.l.b16 %v1154
    %v1525 = vunpack.c.h.b16 %v1154
    %v1526 = vunpack.c.l.b16 %v1155
    %v1527 = vunpack.c.h.b16 %v1155
    %v1528 = vunpack.c.l.b16 %v1156
    %v1529 = vunpack.c.h.b16 %v1156
    %v1530 = vunpack.c.l.b16 %v1157
    %v1531 = vunpack.c.h.b16 %v1157
    %v1532 = vunpack.c.l.b16 %v1158
    %v1533 = vunpack.c.h.b16 %v1158
    %v1534 = vunpack.c.l.b16 %v1159
    %v1535 = vunpack.c.h.b16 %v1159
    %v1536 = vunpack.c.l.b16 %v1160
    %v1537 = vunpack.c.h.b16 %v1160
    %v1538 = vunpack.c.l.b16 %v1161
    %v1539 = vunpack.c.h.b16 %v1161
    %v1540 = vunpack.c.l.b16 %v1162
    %v1541 = vunpack.c.h.b16 %v1162
    %v1542 = vunpack.c.l.b16 %v1163
    %v1543 = vunpack.c.h.b16 %v1163
    %v1544 = vunpack.c.l.b16 %v1164
    %v1545 = vunpack.c.h.b16 %v1164
    %v1546 = vunpack.c.l.b16 %v1165
    %v1547 = vunpack.c.h.b16 %v1165
    %v1548 = vunpack.c.l.b16 %v1166
    %v1549 = vunpack.c.h.b16 %v1166
    %v1550 = vunpack.c.l.b16 %v1167
    %v1551 = vunpack.c.h.b16 %v1167
    %v1552 = vunpack.c.l.b16 %v1168
    %v1553 = vunpack.c.h.b16 %v1168
    %v1554 = vunpack.c.l.b16 %v1169
    %v1555 = vunpack.c.h.b16 %v1169
    %v1556 = vunpack.c.l.b16 %v1170
    %v1557 = vunpack.c.h.b16 %v1170
    %v1558 = vunpack.c.l.b16 %v1171
    %v1559 = vunpack.c.h.b16 %v1171
    %v1560 = vunpack.c.l.b16 %v1172
    %v1561 = vunpack.c.h.b16 %v1172
    %v1562 = vunpack.c.l.b16 %v1173
    %v1563 = vunpack.c.h.b16 %v1173
    %v1564 = vunpack.c.l.b16 %v1174
    %v1565 = vunpack.c.h.b16 %v1174
    %v1566 = vunpack.c.l.b16 %v1175
    %v1567 = vunpack.c.h.b16 %v1175
    %v1568 = vunpack.c.l.b16 %v1176
    %v1569 = vunpack.c.h.b16 %v1176
    %v1570 = vunpack.c.l.b16 %v1177
    %v1571 = vunpack.c.h.b16 %v1177
    %v1572 = vunpack.c.l.b16 %v1178
    %v1573 = vunpack.c.h.b16 %v1178
    %v1574 = vunpack.c.l.b16 %v1179
    %v1575 = vunpack.c.h.b16 %v1179
    %v1576 = vunpack.c.l.b16 %v1180
    %v1577 = vunpack.c.h.b16 %v1180
    %v1578 = vunpack.c.l.b16 %v1181
    %v1579 = vunpack.c.h.b16 %v1181
    %v1580 = vunpack.c.l.b16 %v1182
    %v1581 = vunpack.c.h.b16 %v1182
    %v1582 = vunpack.c.l.b16 %v1183
    %v1583 = vunpack.c.h.b16 %v1183
    %v1584 = vunpack.c.l.b16 %v1184
    %v1585 = vunpack.c.h.b16 %v1184
    %v1586 = vunpack.c.l.b16 %v1185
    %v1587 = vunpack.c.h.b16 %v1185
    %v1588 = vunpack.c.l.b16 %v1186
    %v1589 = vunpack.c.h.b16 %v1186
    %v1590 = vunpack.c.l.b16 %v1187
    %v1591 = vunpack.c.h.b16 %v1187
    %v1592 = vunpack.c.l.b16 %v1188
    %v1593 = vunpack.c.h.b16 %v1188
    %v1594 = vunpack.c.l.b16 %v1189
    %v1595 = vunpack.c.h.b16 %v1189
    %v1596 = vpack.c.b16 %v1344, %v1340
    %v1597 = vpack.c.b16 %v1345, %v1341
    %v1598 = vpack.c.b16 %v1346, %v1342
    %v1599 = vpack.c.b16 %v1347, %v1343
    %v1600 = vpack.c.b16 %v1352, %v1348
    %v1601 = vpack.c.b16 %v1353, %v1349
    %v1602 = vpack.c.b16 %v1354, %v1350
    %v1603 = vpack.c.b16 %v1355, %v1351
    %v1604 = vpack.c.b16 %v1360, %v1356
    %v1605 = vpack.c.b16 %v1361, %v1357
    %v1606 = vpack.c.b16 %v1362, %v1358
    %v1607 = vpack.c.b16 %v1363, %v1359
    %v1608 = vpack.c.b16 %v1368, %v1364
    %v1609 = vpack.c.b16 %v1369, %v1365
    %v1610 = vpack.c.b16 %v1370, %v1366
    %v1611 = vpack.c.b16 %v1371, %v1367
    %v1612 = vpack.c.b16 %v1376, %v1372
    %v1613 = vpack.c.b16 %v1377, %v1373
    %v1614 = vpack.c.b16 %v1378, %v1374
    %v1615 = vpack.c.b16 %v1379, %v1375
    %v1616 = vpack.c.b16 %v1384, %v1380
    %v1617 = vpack.c.b16 %v1385, %v1381
    %v1618 = vpack.c.b16 %v1386, %v1382
    %v1619 = vpack.c.b16 %v1387, %v1383
    %v1620 = vpack.c.b16 %v1392, %v1388
    %v1621 = vpack.c.b16 %v1393, %v1389
    %v1622 = vpack.c.b16 %v1394, %v1390
    %v1623 = vpack.c.b16 %v1395, %v1391
    %v1624 = vpack.c.b16 %v1400, %v1396
    %v1625 = vpack.c.b16 %v1401, %v1397
    %v1626 = vpack.c.b16 %v1402, %v1398
    %v1627 = vpack.c.b16 %v1403, %v1399
    %v1628 = vpack.c.b16 %v1408, %v1404
    %v1629 = vpack.c.b16 %v1409, %v1405
    %v1630 = vpack.c.b16 %v1410, %v1406
    %v1631 = vpack.c.b16 %v1411, %v1407
    %v1632 = vpack.c.b16 %v1416, %v1412
    %v1633 = vpack.c.b16 %v1417, %v1413
    %v1634 = vpack.c.b16 %v1418, %v1414
    %v1635 = vpack.c.b16 %v1419, %v1415
    %v1636 = vpack.c.b16 %v1424, %v1420
    %v1637 = vpack.c.b16 %v1425, %v1421
    %v1638 = vpack.c.b16 %v1426, %v1422
    %v1639 = vpack.c.b16 %v1427, %v1423
    %v1640 = vpack.c.b16 %v1432, %v1428
    %v1641 = vpack.c.b16 %v1433, %v1429
    %v1642 = vpack.c.b16 %v1434, %v1430
    %v1643 = vpack.c.b16 %v1435, %v1431
    %v1644 = vpack.c.b16 %v1440, %v1436
    %v1645 = vpack.c.b16 %v1441, %v1437
    %v1646 = vpack.c.b16 %v1442, %v1438
    %v1647 = vpack.c.b16 %v1443, %v1439
    %v1648 = vpack.c.b16 %v1448, %v1444
    %v1649 = vpack.c.b16 %v1449, %v1445
    %v1650 = vpack.c.b16 %v1450, %v1446
    %v1651 = vpack.c.b16 %v1451, %v1447
    %v1652 = vpack.c.b16 %v1456, %v1452
    %v1653 = vpack.c.b16 %v1457, %v1453
    %v1654 = vpack.c.b16 %v1458, %v1454
    %v1655 = vpack.c.b16 %v1459, %v1455
    %v1656 = vpack.c.b16 %v1464, %v1460
    %v1657 = vpack.c.b16 %v1465, %v1461
    %v1658 = vpack.c.b16 %v1466, %v1462
    %v1659 = vpack.c.b16 %v1467, %v1463
    %v1660 = vpack.c.b16 %v1472, %v1468
    %v1661 = vpack.c.b16 %v1473, %v1469
    %v1662 = vpack.c.b16 %v1474, %v1470
    %v1663 = vpack.c.b16 %v1475, %v1471
    %v1664 = vpack.c.b16 %v1480, %v1476
    %v1665 = vpack.c.b16 %v1481, %v1477
    %v1666 = vpack.c.b16 %v1482, %v1478
    %v1667 = vpack.c.b16 %v1483, %v1479
    %v1668 = vpack.c.b16 %v1488, %v1484
    %v1669 = vpack.c.b16 %v1489, %v1485
    %v1670 = vpack.c.b16 %v1490, %v1486
    %v1671 = vpack.c.b16 %v1491, %v1487
    %v1672 = vpack.c.b16 %v1496, %v1492
    %v1673 = vpack.c.b16 %v1497, %v1493
    %v1674 = vpack.c.b16 %v1498, %v1494
    %v1675 = vpack.c.b16 %v1499, %v1495
    %v1676 = vpack.c.b16 %v1504, %v1500
    %v1677 = vpack.c.b16 %v1505, %v1501
    %v1678 = vpack.c.b16 %v1506, %v1502
    %v1679 = vpack.c.b16 %v1507, %v1503
    %v1680 = vpack.c.b16 %v1512, %v1508
    %v1681 = vpack.c.b16 %v1513, %v1509
    %v1682 = vpack.c.b16 %v1514, %v1510
    %v1683 = vpack.c.b16 %v1515, %v1511
    %v1684 = vpack.c.b16 %v1520, %v1516
    %v1685 = vpack.c.b16 %v1521, %v1517
    %v1686 = vpack.c.b16 %v1522, %v1518
    %v1687 = vpack.c.b16 %v1523, %v1519
    %v1688 = vpack.c.b16 %v1528, %v1524
    %v1689 = vpack.c.b16 %v1529, %v1525
    %v1690 = vpack.c.b16 %v1530, %v1526
    %v1691 = vpack.c.b16 %v1531, %v1527
    %v1692 = vpack.c.b16 %v1536, %v1532
    %v1693 = vpack.c.b16 %v1537, %v1533
    %v1694 = vpack.c.b16 %v1538, %v1534
    %v1695 = vpack.c.b16 %v1539, %v1535
    %v1696 = vpack.c.b16 %v1544, %v1540
    %v1697 = vpack.c.b16 %v1545, %v1541
    %v1698 = vpack.c.b16 %v1546, %v1542
    %v1699 = vpack.c.b16 %v1547, %v1543
    %v1700 = vpack.c.b16 %v1552, %v1548
    %v1701 = vpack.c.b16 %v1553, %v1549
    %v1702 = vpack.c.b16 %v1554, %v1550
    %v1703 = vpack.c.b16 %v1555, %v1551
    %v1704 = vpack.c.b16 %v1560, %v1556
    %v1705 = vpack.c.b16 %v1561, %v1557
    %v1706 = vpack.c.b16 %v1562, %v1558
    %v1707 = vpack.c.b16 %v1563, %v1559
    %v1708 = vpack.c.b16 %v1568, %v1564
    %v1709 = vpack.c.b16 %v1569, %v1565
    %v1710 = vpack.c.b16 %v1570, %v1566
    %v1711 = vpack.c.b16 %v1571, %v1567
    %v1712 = vpack.c.b16 %v1576, %v1572
    %v1713 = vpack.c.b16 %v1577, %v1573
    %v1714 = vpack.c.b16 %v1578, %v1574
    %v1715 = vpack.c.b16 %v1579, %v1575
    %v1716 = vpack.c.b16 %v1584, %v1580
    %v1717 = vpack.c.b16 %v1585, %v1581
    %v1718 = vpack.c.b16 %v1586, %v1582
    %v1719 = vpack.c.b16 %v1587, %v1583
    %v1720 = vpack.c.b16 %v1592, %v1588
    %v1721 = vpack.c.b16 %v1593, %v1589
    %v1722 = vpack.c.b16 %v1594, %v1590
    %v1723 = vpack.c.b16 %v1595, %v1591
    %1852 = vmatprep.subr.bf16.mxu0 %v1625
    %1853 = vmatpush1.bf16.msra.mxu0 %v1624
    %1854 = vmatprep.subr.bf16.mxu0 %v1621
    %1855 = vmatpush1.bf16.msra.mxu0 %v1620
    %1856 = vmatprep.subr.bf16.mxu0 %v1617
    %1857 = vmatpush1.bf16.msra.mxu0 %v1616
    %1858 = vmatprep.subr.bf16.mxu0 %v1613
    %1859 = vmatpush1.bf16.msra.mxu0 %v1612
    %1860 = vmatprep.subr.bf16.mxu0 %v1609
    %1861 = vmatpush1.bf16.msra.mxu0 %v1608
    %1862 = vmatprep.subr.bf16.mxu0 %v1605
    %1863 = vmatpush1.bf16.msra.mxu0 %v1604
    %1864 = vmatprep.subr.bf16.mxu0 %v1601
    %1865 = vmatpush1.bf16.msra.mxu0 %v1600
    %1866 = vmatprep.subr.bf16.mxu0 %v1597
    %1867 = vmatpush1.bf16.msra.mxu0 %v1596
    %1868 = vmatprep.subr.bf16.mxu0 %v1657
    %1869 = vmatpush2.bf16.msra.mxu0 %v1656
    %1870 = vmatprep.subr.bf16.mxu0 %v1653
    %1871 = vmatpush2.bf16.msra.mxu0 %v1652
    %1872 = vmatprep.subr.bf16.mxu0 %v1649
    %1873 = vmatpush2.bf16.msra.mxu0 %v1648
    %1874 = vmatprep.subr.bf16.mxu0 %v1645
    %1875 = vmatpush2.bf16.msra.mxu0 %v1644
    %1876 = vmatprep.subr.bf16.mxu0 %v1641
    %1877 = vmatpush2.bf16.msra.mxu0 %v1640
    %1878 = vmatprep.subr.bf16.mxu0 %v1637
    %1879 = vmatpush2.bf16.msra.mxu0 %v1636
    %1880 = vmatprep.subr.bf16.mxu0 %v1633
    %1881 = vmatpush2.bf16.msra.mxu0 %v1632
    %1882 = vmatprep.subr.bf16.mxu0 %v1629
    %1883 = vmatpush2.bf16.msra.mxu0 %v1628
    %1884 = vmatprep.mubr.bf16.mxu0 %v1059
    %1885 = vmatmul.mubr.bf16.gmra.mxu0 %v1058
    %v1886 = vpop.f32.mrf.mxu0
    %v1887 = vadd.f32 %v1195, %v1886
    %v1888 = vpop.f32.mrf.mxu0
    %v1889 = vadd.f32 %v1199, %v1888
    %v1890 = vpop.f32.mrf.mxu0
    %v1891 = vpop.f32.mrf.mxu0
    %1892 = vdwg.mxu0
    %1893 = vmatprep.subr.bf16.mxu0 %v1689
    %1894 = vmatpush1.bf16.msra.mxu0 %v1688
    %1895 = vmatprep.subr.bf16.mxu0 %v1685
    %1896 = vmatpush1.bf16.msra.mxu0 %v1684
    %1897 = vmatprep.subr.bf16.mxu0 %v1681
    %1898 = vmatpush1.bf16.msra.mxu0 %v1680
    %1899 = vmatprep.subr.bf16.mxu0 %v1677
    %1900 = vmatpush1.bf16.msra.mxu0 %v1676
    %1901 = vmatprep.subr.bf16.mxu0 %v1673
    %1902 = vmatpush1.bf16.msra.mxu0 %v1672
    %1903 = vmatprep.subr.bf16.mxu0 %v1669
    %1904 = vmatpush1.bf16.msra.mxu0 %v1668
    %1905 = vmatprep.subr.bf16.mxu0 %v1665
    %1906 = vmatpush1.bf16.msra.mxu0 %v1664
    %1907 = vmatprep.subr.bf16.mxu0 %v1661
    %1908 = vmatpush1.bf16.msra.mxu0 %v1660
    %1909 = vmatprep.subr.bf16.mxu0 %v1721
    %1910 = vmatpush2.bf16.msra.mxu0 %v1720
    %1911 = vmatprep.subr.bf16.mxu0 %v1717
    %1912 = vmatpush2.bf16.msra.mxu0 %v1716
    %1913 = vmatprep.subr.bf16.mxu0 %v1713
    %1914 = vmatpush2.bf16.msra.mxu0 %v1712
    %1915 = vmatprep.subr.bf16.mxu0 %v1709
    %1916 = vmatpush2.bf16.msra.mxu0 %v1708
    %1917 = vmatprep.subr.bf16.mxu0 %v1705
    %1918 = vmatpush2.bf16.msra.mxu0 %v1704
    %1919 = vmatprep.subr.bf16.mxu0 %v1701
    %1920 = vmatpush2.bf16.msra.mxu0 %v1700
    %1921 = vmatprep.subr.bf16.mxu0 %v1697
    %1922 = vmatpush2.bf16.msra.mxu0 %v1696
    %1923 = vmatprep.subr.bf16.mxu0 %v1693
    %1924 = vmatpush2.bf16.msra.mxu0 %v1692
    %1925 = vmatprep.mubr.bf16.mxu0 %v1061
    %1926 = vmatmul.mubr.bf16.gmra.mxu0 %v1060
    %v1927 = vpop.f32.mrf.mxu0
    %v1928 = vadd.f32 %v1887, %v1927
    %v1929 = vpop.f32.mrf.mxu0
    %v1930 = vadd.f32 %v1889, %v1929
    %v1931 = vpop.f32.mrf.mxu0
    %v1932 = vpop.f32.mrf.mxu0
    %1933 = vdwg.mxu0
    %1934 = vmatprep.subr.bf16.mxu0 %v1627
    %1935 = vmatpush1.bf16.msra.mxu0 %v1626
    %1936 = vmatprep.subr.bf16.mxu0 %v1623
    %1937 = vmatpush1.bf16.msra.mxu0 %v1622
    %1938 = vmatprep.subr.bf16.mxu0 %v1619
    %1939 = vmatpush1.bf16.msra.mxu0 %v1618
    %1940 = vmatprep.subr.bf16.mxu0 %v1615
    %1941 = vmatpush1.bf16.msra.mxu0 %v1614
    %1942 = vmatprep.subr.bf16.mxu0 %v1611
    %1943 = vmatpush1.bf16.msra.mxu0 %v1610
    %1944 = vmatprep.subr.bf16.mxu0 %v1607
    %1945 = vmatpush1.bf16.msra.mxu0 %v1606
    %1946 = vmatprep.subr.bf16.mxu0 %v1603
    %1947 = vmatpush1.bf16.msra.mxu0 %v1602
    %1948 = vmatprep.subr.bf16.mxu0 %v1599
    %1949 = vmatpush1.bf16.msra.mxu0 %v1598
    %1950 = vmatprep.subr.bf16.mxu0 %v1659
    %1951 = vmatpush2.bf16.msra.mxu0 %v1658
    %1952 = vmatprep.subr.bf16.mxu0 %v1655
    %1953 = vmatpush2.bf16.msra.mxu0 %v1654
    %1954 = vmatprep.subr.bf16.mxu0 %v1651
    %1955 = vmatpush2.bf16.msra.mxu0 %v1650
    %1956 = vmatprep.subr.bf16.mxu0 %v1647
    %1957 = vmatpush2.bf16.msra.mxu0 %v1646
    %1958 = vmatprep.subr.bf16.mxu0 %v1643
    %1959 = vmatpush2.bf16.msra.mxu0 %v1642
    %1960 = vmatprep.subr.bf16.mxu0 %v1639
    %1961 = vmatpush2.bf16.msra.mxu0 %v1638
    %1962 = vmatprep.subr.bf16.mxu0 %v1635
    %1963 = vmatpush2.bf16.msra.mxu0 %v1634
    %1964 = vmatprep.subr.bf16.mxu0 %v1631
    %1965 = vmatpush2.bf16.msra.mxu0 %v1630
    %1966 = vmatprep.mubr.bf16.mxu0 %v1059
    %1967 = vmatmul.mubr.bf16.gmra.mxu0 %v1058
    %v1968 = vpop.f32.mrf.mxu0
    %v1969 = vadd.f32 %v1203, %v1968
    %v1970 = vpop.f32.mrf.mxu0
    %v1971 = vadd.f32 %v1207, %v1970
    %v1972 = vpop.f32.mrf.mxu0
    %v1973 = vpop.f32.mrf.mxu0
    %1974 = vdwg.mxu0
    %1975 = vmatprep.subr.bf16.mxu0 %v1691
    %1976 = vmatpush1.bf16.msra.mxu0 %v1690
    %1977 = vmatprep.subr.bf16.mxu0 %v1687
    %1978 = vmatpush1.bf16.msra.mxu0 %v1686
    %1979 = vmatprep.subr.bf16.mxu0 %v1683
    %1980 = vmatpush1.bf16.msra.mxu0 %v1682
    %1981 = vmatprep.subr.bf16.mxu0 %v1679
    %1982 = vmatpush1.bf16.msra.mxu0 %v1678
    %1983 = vmatprep.subr.bf16.mxu0 %v1675
    %1984 = vmatpush1.bf16.msra.mxu0 %v1674
    %1985 = vmatprep.subr.bf16.mxu0 %v1671
    %1986 = vmatpush1.bf16.msra.mxu0 %v1670
    %1987 = vmatprep.subr.bf16.mxu0 %v1667
    %1988 = vmatpush1.bf16.msra.mxu0 %v1666
    %1989 = vmatprep.subr.bf16.mxu0 %v1663
    %1990 = vmatpush1.bf16.msra.mxu0 %v1662
    %1991 = vmatprep.subr.bf16.mxu0 %v1723
    %1992 = vmatpush2.bf16.msra.mxu0 %v1722
    %1993 = vmatprep.subr.bf16.mxu0 %v1719
    %1994 = vmatpush2.bf16.msra.mxu0 %v1718
    %1995 = vmatprep.subr.bf16.mxu0 %v1715
    %1996 = vmatpush2.bf16.msra.mxu0 %v1714
    %1997 = vmatprep.subr.bf16.mxu0 %v1711
    %1998 = vmatpush2.bf16.msra.mxu0 %v1710
    %1999 = vmatprep.subr.bf16.mxu0 %v1707
    %2000 = vmatpush2.bf16.msra.mxu0 %v1706
    %2001 = vmatprep.subr.bf16.mxu0 %v1703
    %2002 = vmatpush2.bf16.msra.mxu0 %v1702
    %2003 = vmatprep.subr.bf16.mxu0 %v1699
    %2004 = vmatpush2.bf16.msra.mxu0 %v1698
    %2005 = vmatprep.subr.bf16.mxu0 %v1695
    %2006 = vmatpush2.bf16.msra.mxu0 %v1694
    %2007 = vmatprep.mubr.bf16.mxu0 %v1061
    %2008 = vmatmul.mubr.bf16.gmra.mxu0 %v1060
    %v2009 = vpop.f32.mrf.mxu0
    %v2010 = vadd.f32 %v1969, %v2009
    %v2011 = vpop.f32.mrf.mxu0
    %v2012 = vadd.f32 %v1971, %v2011
    %v2013 = vpop.f32.mrf.mxu0
    %v2014 = vpop.f32.mrf.mxu0
    %2015 = vdwg.mxu0
    %v2016 = vmax.f32 %v1928, 0.0
    %v2017 = vmax.f32 %v1930, 0.0
    %v2018 = vmax.f32 %v2010, 0.0
    %v2019 = vmax.f32 %v2012, 0.0
    %v2020 = vpack.c.bf16 %v2016, %v2016
    %v2021 = vpack.c.bf16 %v2017, %v2017
    %v2022 = vpack.c.bf16 %v2018, %v2018
    %v2023 = vpack.c.bf16 %v2019, %v2019
    %v2024 = vld [vmem:[#allocation10] sm:$0xf]
    %v2025 = vld [vmem:[#allocation10 + $0x4] sm:$0xf]
    %v2026 = vld [vmem:[#allocation10 + $0x8] sm:$0xf]
    %v2027 = vld [vmem:[#allocation10 + $0xc] sm:$0xf]
    %v2028 = vld [vmem:[#allocation10 + $0x10] sm:$0xf]
    %v2029 = vld [vmem:[#allocation10 + $0x14] sm:$0xf]
    %v2030 = vld [vmem:[#allocation10 + $0x18] sm:$0xf]
    %v2031 = vld [vmem:[#allocation10 + $0x1c] sm:$0xf]
    %v2032 = vld [vmem:[#allocation10 + $0x20] sm:$0xf]
    %v2033 = vld [vmem:[#allocation10 + $0x24] sm:$0xf]
    %v2034 = vld [vmem:[#allocation10 + $0x28] sm:$0xf]
    %v2035 = vld [vmem:[#allocation10 + $0x2c] sm:$0xf]
    %v2036 = vld [vmem:[#allocation10 + $0x30] sm:$0xf]
    %v2037 = vld [vmem:[#allocation10 + $0x34] sm:$0xf]
    %v2038 = vld [vmem:[#allocation10 + $0x38] sm:$0xf]
    %v2039 = vld [vmem:[#allocation10 + $0x3c] sm:$0xf]
    %v2040 = vld [vmem:[#allocation10 + $0x40] sm:$0xf]
    %v2041 = vld [vmem:[#allocation10 + $0x44] sm:$0xf]
    %v2042 = vld [vmem:[#allocation10 + $0x48] sm:$0xf]
    %v2043 = vld [vmem:[#allocation10 + $0x4c] sm:$0xf]
    %v2044 = vld [vmem:[#allocation10 + $0x50] sm:$0xf]
    %v2045 = vld [vmem:[#allocation10 + $0x54] sm:$0xf]
    %v2046 = vld [vmem:[#allocation10 + $0x58] sm:$0xf]
    %v2047 = vld [vmem:[#allocation10 + $0x5c] sm:$0xf]
    %v2048 = vld [vmem:[#allocation10 + $0x60] sm:$0xf]
    %v2049 = vld [vmem:[#allocation10 + $0x64] sm:$0xf]
    %v2050 = vld [vmem:[#allocation10 + $0x68] sm:$0xf]
    %v2051 = vld [vmem:[#allocation10 + $0x6c] sm:$0xf]
    %v2052 = vld [vmem:[#allocation10 + $0x70] sm:$0xf]
    %v2053 = vld [vmem:[#allocation10 + $0x74] sm:$0xf]
    %v2054 = vld [vmem:[#allocation10 + $0x78] sm:$0xf]
    %v2055 = vld [vmem:[#allocation10 + $0x7c] sm:$0xf]
    %v2056 = vld [vmem:[#allocation10 + $0x80] sm:$0xf]
    %v2057 = vld [vmem:[#allocation10 + $0x84] sm:$0xf]
    %v2058 = vld [vmem:[#allocation10 + $0x88] sm:$0xf]
    %v2059 = vld [vmem:[#allocation10 + $0x8c] sm:$0xf]
    %v2060 = vld [vmem:[#allocation10 + $0x90] sm:$0xf]
    %v2061 = vld [vmem:[#allocation10 + $0x94] sm:$0xf]
    %v2062 = vld [vmem:[#allocation10 + $0x98] sm:$0xf]
    %v2063 = vld [vmem:[#allocation10 + $0x9c] sm:$0xf]
    %v2064 = vld [vmem:[#allocation10 + $0xa0] sm:$0xf]
    %v2065 = vld [vmem:[#allocation10 + $0xa4] sm:$0xf]
    %v2066 = vld [vmem:[#allocation10 + $0xa8] sm:$0xf]
    %v2067 = vld [vmem:[#allocation10 + $0xac] sm:$0xf]
    %v2068 = vld [vmem:[#allocation10 + $0xb0] sm:$0xf]
    %v2069 = vld [vmem:[#allocation10 + $0xb4] sm:$0xf]
    %v2070 = vld [vmem:[#allocation10 + $0xb8] sm:$0xf]
    %v2071 = vld [vmem:[#allocation10 + $0xbc] sm:$0xf]
    %v2072 = vld [vmem:[#allocation10 + $0xc0] sm:$0xf]
    %v2073 = vld [vmem:[#allocation10 + $0xc4] sm:$0xf]
    %v2074 = vld [vmem:[#allocation10 + $0xc8] sm:$0xf]
    %v2075 = vld [vmem:[#allocation10 + $0xcc] sm:$0xf]
    %v2076 = vld [vmem:[#allocation10 + $0xd0] sm:$0xf]
    %v2077 = vld [vmem:[#allocation10 + $0xd4] sm:$0xf]
    %v2078 = vld [vmem:[#allocation10 + $0xd8] sm:$0xf]
    %v2079 = vld [vmem:[#allocation10 + $0xdc] sm:$0xf]
    %v2080 = vld [vmem:[#allocation10 + $0xe0] sm:$0xf]
    %v2081 = vld [vmem:[#allocation10 + $0xe4] sm:$0xf]
    %v2082 = vld [vmem:[#allocation10 + $0xe8] sm:$0xf]
    %v2083 = vld [vmem:[#allocation10 + $0xec] sm:$0xf]
    %v2084 = vld [vmem:[#allocation10 + $0xf0] sm:$0xf]
    %v2085 = vld [vmem:[#allocation10 + $0xf4] sm:$0xf]
    %v2086 = vld [vmem:[#allocation10 + $0xf8] sm:$0xf]
    %v2087 = vld [vmem:[#allocation10 + $0xfc] sm:$0xf]
    %v2088 = vld [vmem:[%s6] sm:$0x1]
    %v2090 = vlaneseq
    %v2091 = vshrl.u32 %v2090, 7
    %v2092 = vsub.s32 0, %v2091
    %v2093 = vrot.slane %v2088, %v2092
    %v2159 = vunpack.c.l.b16 %v2024
    %v2160 = vunpack.c.l.b16 %v2025
    %v2161 = vunpack.c.l.b16 %v2026
    %v2162 = vunpack.c.l.b16 %v2027
    %v2163 = vunpack.c.l.b16 %v2028
    %v2164 = vunpack.c.l.b16 %v2029
    %v2165 = vunpack.c.l.b16 %v2030
    %v2166 = vunpack.c.l.b16 %v2031
    %v2167 = vunpack.c.l.b16 %v2032
    %v2168 = vunpack.c.l.b16 %v2033
    %v2169 = vunpack.c.l.b16 %v2034
    %v2170 = vunpack.c.l.b16 %v2035
    %v2171 = vunpack.c.l.b16 %v2036
    %v2172 = vunpack.c.l.b16 %v2037
    %v2173 = vunpack.c.l.b16 %v2038
    %v2174 = vunpack.c.l.b16 %v2039
    %v2175 = vunpack.c.l.b16 %v2040
    %v2176 = vunpack.c.l.b16 %v2041
    %v2177 = vunpack.c.l.b16 %v2042
    %v2178 = vunpack.c.l.b16 %v2043
    %v2179 = vunpack.c.l.b16 %v2044
    %v2180 = vunpack.c.l.b16 %v2045
    %v2181 = vunpack.c.l.b16 %v2046
    %v2182 = vunpack.c.l.b16 %v2047
    %v2183 = vunpack.c.l.b16 %v2048
    %v2184 = vunpack.c.l.b16 %v2049
    %v2185 = vunpack.c.l.b16 %v2050
    %v2186 = vunpack.c.l.b16 %v2051
    %v2187 = vunpack.c.l.b16 %v2052
    %v2188 = vunpack.c.l.b16 %v2053
    %v2189 = vunpack.c.l.b16 %v2054
    %v2190 = vunpack.c.l.b16 %v2055
    %v2191 = vunpack.c.l.b16 %v2056
    %v2192 = vunpack.c.l.b16 %v2057
    %v2193 = vunpack.c.l.b16 %v2058
    %v2194 = vunpack.c.l.b16 %v2059
    %v2195 = vunpack.c.l.b16 %v2060
    %v2196 = vunpack.c.l.b16 %v2061
    %v2197 = vunpack.c.l.b16 %v2062
    %v2198 = vunpack.c.l.b16 %v2063
    %v2199 = vunpack.c.l.b16 %v2064
    %v2200 = vunpack.c.l.b16 %v2065
    %v2201 = vunpack.c.l.b16 %v2066
    %v2202 = vunpack.c.l.b16 %v2067
    %v2203 = vunpack.c.l.b16 %v2068
    %v2204 = vunpack.c.l.b16 %v2069
    %v2205 = vunpack.c.l.b16 %v2070
    %v2206 = vunpack.c.l.b16 %v2071
    %v2207 = vunpack.c.l.b16 %v2072
    %v2208 = vunpack.c.l.b16 %v2073
    %v2209 = vunpack.c.l.b16 %v2074
    %v2210 = vunpack.c.l.b16 %v2075
    %v2211 = vunpack.c.l.b16 %v2076
    %v2212 = vunpack.c.l.b16 %v2077
    %v2213 = vunpack.c.l.b16 %v2078
    %v2214 = vunpack.c.l.b16 %v2079
    %v2215 = vunpack.c.l.b16 %v2080
    %v2216 = vunpack.c.l.b16 %v2081
    %v2217 = vunpack.c.l.b16 %v2082
    %v2218 = vunpack.c.l.b16 %v2083
    %v2219 = vunpack.c.l.b16 %v2084
    %v2220 = vunpack.c.l.b16 %v2085
    %v2221 = vunpack.c.l.b16 %v2086
    %v2222 = vunpack.c.l.b16 %v2087
    %v2223 = vpack.c.b16 %v2160, %v2159
    %v2224 = vpack.c.b16 %v2162, %v2161
    %v2225 = vpack.c.b16 %v2164, %v2163
    %v2226 = vpack.c.b16 %v2166, %v2165
    %v2227 = vpack.c.b16 %v2168, %v2167
    %v2228 = vpack.c.b16 %v2170, %v2169
    %v2229 = vpack.c.b16 %v2172, %v2171
    %v2230 = vpack.c.b16 %v2174, %v2173
    %v2231 = vpack.c.b16 %v2176, %v2175
    %v2232 = vpack.c.b16 %v2178, %v2177
    %v2233 = vpack.c.b16 %v2180, %v2179
    %v2234 = vpack.c.b16 %v2182, %v2181
    %v2235 = vpack.c.b16 %v2184, %v2183
    %v2236 = vpack.c.b16 %v2186, %v2185
    %v2237 = vpack.c.b16 %v2188, %v2187
    %v2238 = vpack.c.b16 %v2190, %v2189
    %v2239 = vpack.c.b16 %v2192, %v2191
    %v2240 = vpack.c.b16 %v2194, %v2193
    %v2241 = vpack.c.b16 %v2196, %v2195
    %v2242 = vpack.c.b16 %v2198, %v2197
    %v2243 = vpack.c.b16 %v2200, %v2199
    %v2244 = vpack.c.b16 %v2202, %v2201
    %v2245 = vpack.c.b16 %v2204, %v2203
    %v2246 = vpack.c.b16 %v2206, %v2205
    %v2247 = vpack.c.b16 %v2208, %v2207
    %v2248 = vpack.c.b16 %v2210, %v2209
    %v2249 = vpack.c.b16 %v2212, %v2211
    %v2250 = vpack.c.b16 %v2214, %v2213
    %v2251 = vpack.c.b16 %v2216, %v2215
    %v2252 = vpack.c.b16 %v2218, %v2217
    %v2253 = vpack.c.b16 %v2220, %v2219
    %v2254 = vpack.c.b16 %v2222, %v2221
    %2287 = vmatprep.subr.bf16.mxu0 0
    %2288 = vmatpush1.bf16.msra.mxu0 %v2230
    %2289 = vmatprep.subr.bf16.mxu0 0
    %2290 = vmatpush1.bf16.msra.mxu0 %v2229
    %2291 = vmatprep.subr.bf16.mxu0 0
    %2292 = vmatpush1.bf16.msra.mxu0 %v2228
    %2293 = vmatprep.subr.bf16.mxu0 0
    %2294 = vmatpush1.bf16.msra.mxu0 %v2227
    %2295 = vmatprep.subr.bf16.mxu0 0
    %2296 = vmatpush1.bf16.msra.mxu0 %v2226
    %2297 = vmatprep.subr.bf16.mxu0 0
    %2298 = vmatpush1.bf16.msra.mxu0 %v2225
    %2299 = vmatprep.subr.bf16.mxu0 0
    %2300 = vmatpush1.bf16.msra.mxu0 %v2224
    %2301 = vmatprep.subr.bf16.mxu0 0
    %2302 = vmatpush1.bf16.msra.mxu0 %v2223
    %2303 = vmatprep.subr.bf16.mxu0 0
    %2304 = vmatpush2.bf16.msra.mxu0 %v2238
    %2305 = vmatprep.subr.bf16.mxu0 0
    %2306 = vmatpush2.bf16.msra.mxu0 %v2237
    %2307 = vmatprep.subr.bf16.mxu0 0
    %2308 = vmatpush2.bf16.msra.mxu0 %v2236
    %2309 = vmatprep.subr.bf16.mxu0 0
    %2310 = vmatpush2.bf16.msra.mxu0 %v2235
    %2311 = vmatprep.subr.bf16.mxu0 0
    %2312 = vmatpush2.bf16.msra.mxu0 %v2234
    %2313 = vmatprep.subr.bf16.mxu0 0
    %2314 = vmatpush2.bf16.msra.mxu0 %v2233
    %2315 = vmatprep.subr.bf16.mxu0 0
    %2316 = vmatpush2.bf16.msra.mxu0 %v2232
    %2317 = vmatprep.subr.bf16.mxu0 0
    %2318 = vmatpush2.bf16.msra.mxu0 %v2231
    %2319 = vmatprep.mubr.bf16.mxu0 %v2021
    %2320 = vmatmul.mubr.bf16.gmra.mxu0 %v2020
    %v2321 = vpop.f32.mrf.mxu0
    %v2322 = vadd.f32 %v2093, %v2321
    %v2323 = vpop.f32.mrf.mxu0
    %v2324 = vpop.f32.mrf.mxu0
    %v2325 = vpop.f32.mrf.mxu0
    %2326 = vdwg.mxu0
    %2327 = vmatprep.subr.bf16.mxu0 0
    %2328 = vmatpush1.bf16.msra.mxu0 %v2246
    %2329 = vmatprep.subr.bf16.mxu0 0
    %2330 = vmatpush1.bf16.msra.mxu0 %v2245
    %2331 = vmatprep.subr.bf16.mxu0 0
    %2332 = vmatpush1.bf16.msra.mxu0 %v2244
    %2333 = vmatprep.subr.bf16.mxu0 0
    %2334 = vmatpush1.bf16.msra.mxu0 %v2243
    %2335 = vmatprep.subr.bf16.mxu0 0
    %2336 = vmatpush1.bf16.msra.mxu0 %v2242
    %2337 = vmatprep.subr.bf16.mxu0 0
    %2338 = vmatpush1.bf16.msra.mxu0 %v2241
    %2339 = vmatprep.subr.bf16.mxu0 0
    %2340 = vmatpush1.bf16.msra.mxu0 %v2240
    %2341 = vmatprep.subr.bf16.mxu0 0
    %2342 = vmatpush1.bf16.msra.mxu0 %v2239
    %2343 = vmatprep.subr.bf16.mxu0 0
    %2344 = vmatpush2.bf16.msra.mxu0 %v2254
    %2345 = vmatprep.subr.bf16.mxu0 0
    %2346 = vmatpush2.bf16.msra.mxu0 %v2253
    %2347 = vmatprep.subr.bf16.mxu0 0
    %2348 = vmatpush2.bf16.msra.mxu0 %v2252
    %2349 = vmatprep.subr.bf16.mxu0 0
    %2350 = vmatpush2.bf16.msra.mxu0 %v2251
    %2351 = vmatprep.subr.bf16.mxu0 0
    %2352 = vmatpush2.bf16.msra.mxu0 %v2250
    %2353 = vmatprep.subr.bf16.mxu0 0
    %2354 = vmatpush2.bf16.msra.mxu0 %v2249
    %2355 = vmatprep.subr.bf16.mxu0 0
    %2356 = vmatpush2.bf16.msra.mxu0 %v2248
    %2357 = vmatprep.subr.bf16.mxu0 0
    %2358 = vmatpush2.bf16.msra.mxu0 %v2247
    %2359 = vmatprep.mubr.bf16.mxu0 %v2023
    %2360 = vmatmul.mubr.bf16.gmra.mxu0 %v2022
    %v2361 = vpop.f32.mrf.mxu0
    %v2362 = vadd.f32 %v2322, %v2361
    %v2363 = vpop.f32.mrf.mxu0
    %v2364 = vpop.f32.mrf.mxu0
    %v2365 = vpop.f32.mrf.mxu0
    %2366 = vdwg.mxu0
    %2367 = vst [vmem:[#allocation11] sm:$0xff] %v2362
    // Predicated region
    $region50: #{usps_label_predictor.1} parent=1 // pred_check
      _
    $region51: #{usps_label_predictor.1} parent=1 // pred_check_branch
      %2369 = sbr.rel (0) target = $region53
    $region52: #{usps_label_predictor.1} parent=1 // pred_region
      %s2371 = ssub.s32 128, 128
      %2372 = vsyncadd [#allocation4], %s2371
      %s2374 = sshll.u32 [#allocation11], 4
      %s2375 = int_to_ptr.vmem [resolvable:$true] %s2374
      %2377 = dma.vmem_to_hbm [thread:$0]  %s2375, 128, %s7, [#allocation4]
    $region53: #{usps_label_predictor.1} parent=1 // pred_fallthru
      _
    // Predicated region
    $region54: #{usps_label_predictor.1} parent=1 // pred_check
      _
    $region55: #{usps_label_predictor.1} parent=1 // pred_check_branch
      %2379 = sbr.rel (0) target = $region57
    $region56: #{usps_label_predictor.1} parent=1 // pred_region
      %2380 = dma.done [#allocation4], 128
    $region57: #{usps_label_predictor.1} parent=1 // pred_fallthru
      _
    %2381 = vsyncpa [#allocation3], 1
    %2382 = vsyncpa [#allocation6], 1
    %2383 = vsyncpa [#allocation9], 1
    %2384 = vsyncpa [#allocation4], 1

</llo_original>
